<compile_context>
chip_gen: v5e
topology: v5e:2x2
jax: 0.10.0
libtpu: 0.0.40
codegen_flags: <defaults>
</compile_context>

<pallas_src>
import math

import jax
import jax.numpy as jnp
from jax import lax
from jax.experimental import pallas as pl
from jax.experimental.pallas import tpu as pltpu


_PARAM_ORDER = ("wqkv", "bqkv", "wo", "bo", "g1", "be1",
                "w1", "b1", "w2", "b2", "g2", "be2")

_NEG_INF = -1.0e9
_V7X_SAFE_BUDGET = 48 * 1024 * 1024   # conservative vs v7x's 64 MiB physical VMEM


def _layer_norm(v, gamma, beta, eps=1e-12):
    # matches torch reference: mean / var(unbiased=False) over last dim, eps=1e-12
    mean = jnp.mean(v, axis=-1, keepdims=True)
    var = jnp.mean((v - mean) ** 2, axis=-1, keepdims=True)
    return gamma * ((v - mean) * lax.rsqrt(var + eps)) + beta


def _make_encoder_kernel(num_heads: int, collect_attn: bool):
    """Kernel over grid (batch_block, layer). Activation lives in VMEM scratch."""

    def kernel(x_ref, bias_ref,
               wqkv_ref, bqkv_ref, wo_ref, bo_ref, g1_ref, be1_ref,
               w1_ref, b1_ref, w2_ref, b2_ref, g2_ref, be2_ref,
               *rest):
        if collect_attn:
            out_ref, attnw_ref, x_scr = rest
        else:
            out_ref, x_scr = rest
            attnw_ref = None

        l = pl.program_id(1)
        n_layers = pl.num_programs(1)

        TB, S, D = x_scr.shape
        M = TB * S
        H = num_heads
        hd = D // H

        # Load the input activation into the resident VMEM carry at layer 0.
        @pl.when(l == 0)
        def _():
            x_scr[...] = x_ref[...]

        x = x_scr[...].reshape(M, D)                  # f32 activations
        x_bf = x.astype(jnp.bfloat16)

        # ---- fused QKV projection: one wide MXU pass (M, D) @ (D, 3D) ----
        # 1/sqrt(head_dim) is already folded into the Q columns at init time.
        qkv = jnp.dot(x_bf, wqkv_ref[0],
                      preferred_element_type=jnp.float32) + bqkv_ref[0]
        q = qkv[:, 0 * D:1 * D]
        k = qkv[:, 1 * D:2 * D]
        v = qkv[:, 2 * D:3 * D]

        # Hoisted additive mask bias: one cast, reused by every head (f32 math).
        bias = bias_ref[...].astype(jnp.float32)      # (TB, S, S)

        # ---- per-head attention (heads unrolled; batch handled by einsum) ----
        ctx_heads = []
        for h in range(H):
            lo = h * hd
            qh = q[:, lo:lo + hd].astype(jnp.bfloat16).reshape(TB, S, hd)
            kh = k[:, lo:lo + hd].astype(jnp.bfloat16).reshape(TB, S, hd)
            vh = v[:, lo:lo + hd].astype(jnp.bfloat16).reshape(TB, S, hd)

            s = jnp.einsum("bqd,bkd->bqk", qh, kh,
                           preferred_element_type=jnp.float32)    # (TB, S, S) f32
            s = s + bias
            m = jnp.max(s, axis=-1, keepdims=True)
            e = jnp.exp(s - m)
            w = e / jnp.sum(e, axis=-1, keepdims=True)            # exact softmax

            if attnw_ref is not None:
                attnw_ref[0, h] = w.astype(attnw_ref.dtype)       # bf16 (TB, S, S)

            ch = jnp.einsum("bqk,bkd->bqd", w.astype(jnp.bfloat16), vh,
                            preferred_element_type=jnp.float32)   # (TB, S, hd)
            ctx_heads.append(ch)

        # One lane-dense (M, D) context slab (heads are contiguous along D).
        ctx = jnp.concatenate(ctx_heads, axis=-1).reshape(M, D)

        # ---- output projection + residual + layernorm 1 (f32 elementwise) ----
        attn_out = jnp.dot(ctx.astype(jnp.bfloat16), wo_ref[0],
                           preferred_element_type=jnp.float32) + bo_ref[0]
        out1 = _layer_norm(x + attn_out, g1_ref[0], be1_ref[0])

        # ---- position-wise feed-forward + residual + layernorm 2 ----
        h1 = jnp.dot(out1.astype(jnp.bfloat16), w1_ref[0],
                     preferred_element_type=jnp.float32) + b1_ref[0]
        h1 = jnp.maximum(h1, 0.0)
        ff = jnp.dot(h1.astype(jnp.bfloat16), w2_ref[0],
                     preferred_element_type=jnp.float32) + b2_ref[0]
        out2 = _layer_norm(out1 + ff, g2_ref[0], be2_ref[0])

        # carry activation to the next layer in VMEM (no HBM round-trip)
        x_scr[...] = out2.reshape(TB, S, D)

        @pl.when(l == n_layers - 1)
        def _():
            out_ref[...] = out2.reshape(TB, S, D)

    return kernel


def _vmem_estimate_bytes(TB, S, D, d_ff, num_heads, return_attn):
    """Honest VMEM footprint estimate for one grid step (double-buffered blocks)."""
    f32, bf16 = 4, 2
    weight_blk = (D * 3 * D * bf16 + 3 * D * f32      # wqkv / bqkv
                  + D * D * bf16 + D * f32            # wo / bo
                  + 4 * D * f32                       # g1, be1, g2, be2
                  + D * d_ff * bf16 + d_ff * f32      # w1 / b1
                  + d_ff * D * bf16 + D * f32)        # w2 / b2
    io_blk = (TB * S * D * f32                        # x block
              + TB * S * S * bf16                     # additive mask bias block
              + TB * S * D * f32)                     # out block
    attn_blk = (num_heads * TB * S * S * bf16) if return_attn else 0
    scratch = TB * S * D * f32                        # activation carry
    temps = (3 * TB * S * S * f32                     # scores / exp / weights
             + TB * S * 3 * D * f32                   # fused qkv activations
             + 2 * TB * S * D * f32                   # ctx slab + residual
             + TB * S * d_ff * f32)                   # ffn hidden
    return 2 * (weight_blk + io_blk + attn_blk) + scratch + temps


def _vmem_limit_bytes(estimate):
    # headroom over the estimate; cap below v5e/v6e physical 128 MiB
    return int(min(max(int(estimate * 1.5), 32 * 1024 * 1024), 112 * 1024 * 1024))


def _pick_batch_block(B, S, D, d_ff, num_heads, return_attn):
    # Prefer >= 2 batch blocks so the "parallel" axis feeds both v7x TensorCores,
    # then shrink further only if a block does not fit the v7x-safe VMEM budget.
    TB = B // 2 if (B >= 2 and B % 2 == 0) else B
    while TB > 1 and _vmem_estimate_bytes(TB, S, D, d_ff, num_heads,
                                          return_attn) > _V7X_SAFE_BUDGET:
        TB = next((t for t in range(TB - 1, 0, -1) if B % t == 0), 1)
    return TB


def encoder_forward(x, mask, params, *, num_heads,
                    batch_block=None, return_attn_weights=False):
    """Full Encoder in one pallas_call.

    x: (B, S, D) f32, mask: (B, S, S) f32 (nonzero = attend).
    params: dict of layer-stacked arrays (see init_encoder_params).
    Returns (out, [attn_weights per layer]) like the PyTorch module.
    Attention weights (if requested) are returned in bfloat16.
    """
    B, S, D = x.shape
    L = params["wqkv"].shape[0]
    d_ff = params["w1"].shape[-1]
    assert D % num_heads == 0

    if batch_block is None:
        TB = _pick_batch_block(B, S, D, d_ff, num_heads, return_attn_weights)
    else:
        TB = batch_block
    assert B % TB == 0

    # Convert the mask to an additive bf16 bias once (0 = attend, -1e9 = masked).
    mask_bias = jnp.where(mask != 0, 0.0, _NEG_INF).astype(jnp.bfloat16)

    def wspec(arr):
        blk = (1,) + tuple(arr.shape[1:])
        return pl.BlockSpec(blk, lambda b, l: (l, 0, 0))

    in_specs = [
        pl.BlockSpec((TB, S, D), lambda b, l: (b, 0, 0)),   # x
        pl.BlockSpec((TB, S, S), lambda b, l: (b, 0, 0)),   # additive mask bias
    ] + [wspec(params[name]) for name in _PARAM_ORDER]

    out_spec_x = pl.BlockSpec((TB, S, D), lambda b, l: (b, 0, 0))
    out_shape_x = jax.ShapeDtypeStruct((B, S, D), jnp.float32)

    if return_attn_weights:
        out_specs = (out_spec_x,
                     pl.BlockSpec((1, num_heads, TB, S, S),
                                  lambda b, l: (l, 0, b, 0, 0)))
        out_shape = (out_shape_x,
                     jax.ShapeDtypeStruct((L, num_heads, B, S, S), jnp.bfloat16))
    else:
        out_specs = out_spec_x
        out_shape = out_shape_x

    kernel = _make_encoder_kernel(num_heads, return_attn_weights)
    est = _vmem_estimate_bytes(TB, S, D, d_ff, num_heads, return_attn_weights)

    call = pl.pallas_call(
        kernel,
        grid_spec=pltpu.PrefetchScalarGridSpec(
            num_scalar_prefetch=0,
            grid=(B // TB, L),
            in_specs=in_specs,
            out_specs=out_specs,
            scratch_shapes=[
                pltpu.VMEM((TB, S, D), jnp.float32),       # activation carry
            ],
        ),
        out_shape=out_shape,
        compiler_params=pltpu.CompilerParams(
            dimension_semantics=("parallel", "arbitrary"),
            vmem_limit_bytes=_vmem_limit_bytes(est),
        ),
    )

    args = (x, mask_bias) + tuple(params[name] for name in _PARAM_ORDER)
    if return_attn_weights:
        out, attn = call(*args)
        # (L, H, B, S, S) -> list of L arrays, each (B, H, S, S) like the module
        return out, list(jnp.swapaxes(attn, 1, 2))
    out = call(*args)
    return out, []


# -----------------------------------------------------------------------------
# Deterministic parameter initialization (mirrors the module's __init__ shapes),
# stacked over layers. Weight matrices are stored in bf16 (MXU operands); biases
# and layernorm params stay in f32. 1/sqrt(head_dim) is folded into the Q slice
# of the fused QKV projection.
# -----------------------------------------------------------------------------
def init_encoder_params(key, n_layers, d_model, num_heads, d_ff):
    head_dim = d_model // num_heads
    scale = 1.0 / math.sqrt(float(head_dim))

    def lin(k, fan_in, fan_out):
        bound = 1.0 / math.sqrt(fan_in)
        kw, kb = jax.random.split(k)
        w = jax.random.uniform(kw, (fan_in, fan_out), jnp.float32, -bound, bound)
        b = jax.random.uniform(kb, (1, fan_out), jnp.float32, -bound, bound)
        return w, b

    per = {name: [] for name in _PARAM_ORDER}
    for _ in range(n_layers):
        key, *ks = jax.random.split(key, 7)
        wq, bq = lin(ks[0], d_model, d_model)
        wk, bk = lin(ks[1], d_model, d_model)
        wv, bv = lin(ks[2], d_model, d_model)
        wo, bo = lin(ks[3], d_model, d_model)
        w1, b1 = lin(ks[4], d_model, d_ff)
        w2, b2 = lin(ks[5], d_ff, d_model)
        # fold softmax scale into Q projection (weights AND bias)
        per["wqkv"].append(jnp.concatenate([wq * scale, wk, wv], axis=1))  # (D, 3D)
        per["bqkv"].append(jnp.concatenate([bq * scale, bk, bv], axis=1))  # (1, 3D)
        per["wo"].append(wo)
        per["bo"].append(bo)
        per["g1"].append(jnp.ones((1, d_model), jnp.float32))
        per["be1"].append(jnp.zeros((1, d_model), jnp.float32))
        per["w1"].append(w1)
        per["b1"].append(b1)
        per["w2"].append(w2)
        per["b2"].append(b2)
        per["g2"].append(jnp.ones((1, d_model), jnp.float32))
        per["be2"].append(jnp.zeros((1, d_model), jnp.float32))

    stacked = {k: jnp.stack(v, axis=0) for k, v in per.items()}
    for k in ("wqkv", "wo", "w1", "w2"):
        stacked[k] = stacked[k].astype(jnp.bfloat16)
    return stacked


# -----------------------------------------------------------------------------
# Pure-JAX f32 reference (same parameters, exact math) for correctness checking.
# -----------------------------------------------------------------------------
def encoder_reference(x, mask, params, num_heads):
    B, S, D = x.shape
    L = params["wqkv"].shape[0]
    H = num_heads
    hd = D // H
    out = x
    attn_list = []
    for l in range(L):
        wqkv = params["wqkv"][l].astype(jnp.float32)
        bqkv = params["bqkv"][l]
        wo = params["wo"][l].astype(jnp.float32)
        bo = params["bo"][l]
        w1 = params["w1"][l].astype(jnp.float32)
        b1 = params["b1"][l]
        w2 = params["w2"][l].astype(jnp.float32)
        b2 = params["b2"][l]

        qkv = out @ wqkv + bqkv                            # scale already folded
        q, k, v = qkv[..., :D], qkv[..., D:2 * D], qkv[..., 2 * D:]

        def split(t):
            return t.reshape(B, S, H, hd).transpose(0, 2, 1, 3)   # (B, H, S, hd)

        qh, kh, vh = split(q), split(k), split(v)
        s = jnp.einsum("bhqd,bhkd->bhqk", qh, kh)
        s = jnp.where(mask[:, None] == 0, _NEG_INF, s)
        w = jax.nn.softmax(s, axis=-1)
        ctx = jnp.einsum("bhqk,bhkd->bhqd", w, vh)
        ctx = ctx.transpose(0, 2, 1, 3).reshape(B, S, D)

        attn_out = ctx @ wo + bo
        out1 = _layer_norm(out + attn_out, params["g1"][l], params["be1"][l])
        h1 = jnp.maximum(out1 @ w1 + b1, 0.0)
        ff = h1 @ w2 + b2
        out = _layer_norm(out1 + ff, params["g2"][l], params["be2"][l])
        attn_list.append(w)
    return out, attn_list


if __name__ == "__main__":
    # Small shapes consistent with Encoder(d_model, num_heads, n_layers, d_ff, dropout)
    B, S = 2, 8
    d_model, num_heads, n_layers, d_ff = 32, 4, 2, 64

    key = jax.random.PRNGKey(0)
    kx, kp = jax.random.split(key)

    x = jax.random.normal(kx, (B, S, d_model), jnp.float32)
    # full-visibility mask (nonzero = attend); shape [B, S, S]
    mask = jnp.ones((B, S, S), jnp.float32)

    params = init_encoder_params(kp, n_layers, d_model, num_heads, d_ff)

    # 1) default (performance) path: no attention-weight writeback
    out_fast, attn_fast = encoder_forward(x, mask, params, num_heads=num_heads)
    out_fast = jax.block_until_ready(out_fast)
    assert out_fast.shape == (B, S, d_model)
    assert attn_fast == []

    # 2) module-semantics path: also return per-layer attention weights (bf16)
    out, attn_weights = encoder_forward(x, mask, params, num_heads=num_heads,
                                        return_attn_weights=True)
    out = jax.block_until_ready(out)
    for w in attn_weights:
        jax.block_until_ready(w)

    assert out.shape == (B, S, d_model)
    assert len(attn_weights) == n_layers
    assert all(w.shape == (B, num_heads, S, S) for w in attn_weights)

    # numerical check against a pure-JAX f32 reference (bf16 matmul tolerance)
    ref_out, ref_attn = encoder_reference(x, mask, params, num_heads)
    assert jnp.allclose(out, ref_out, atol=3e-2, rtol=3e-2), "output mismatch"
    assert jnp.allclose(out_fast, ref_out, atol=3e-2, rtol=3e-2), "fast-path mismatch"
    for wk, wr in zip(attn_weights, ref_attn):
        assert jnp.allclose(wk.astype(jnp.float32), wr, atol=3e-2, rtol=3e-2), \
            "attention-weight mismatch"

    print("KERNEL_OK")
</pallas_src>

<mosaic_0001>
module attributes {stable_mosaic.version = 11 : i64} {
  func.func @kernel(%arg0: i32, %arg1: i32, %arg2: memref<1x8x32xf32, #tpu.memory_space<vmem>>, %arg3: memref<1x8x8xbf16, #tpu.memory_space<vmem>>, %arg4: memref<1x32x96xbf16, #tpu.memory_space<vmem>>, %arg5: memref<1x1x96xf32, #tpu.memory_space<vmem>>, %arg6: memref<1x32x32xbf16, #tpu.memory_space<vmem>>, %arg7: memref<1x1x32xf32, #tpu.memory_space<vmem>>, %arg8: memref<1x1x32xf32, #tpu.memory_space<vmem>>, %arg9: memref<1x1x32xf32, #tpu.memory_space<vmem>>, %arg10: memref<1x32x64xbf16, #tpu.memory_space<vmem>>, %arg11: memref<1x1x64xf32, #tpu.memory_space<vmem>>, %arg12: memref<1x64x32xbf16, #tpu.memory_space<vmem>>, %arg13: memref<1x1x32xf32, #tpu.memory_space<vmem>>, %arg14: memref<1x1x32xf32, #tpu.memory_space<vmem>>, %arg15: memref<1x1x32xf32, #tpu.memory_space<vmem>>, %arg16: memref<1x8x32xf32, #tpu.memory_space<vmem>>, %arg17: memref<1x8x32xf32, #tpu.memory_space<vmem>>) attributes {dimension_semantics = [#tpu.dimension_semantics<parallel>, #tpu.dimension_semantics<arbitrary>], iteration_bounds = array<i64: 2, 2>, scalar_prefetch = 0 : i64, scratch_operands = 1 : i64, tpu.core_type = #tpu.core_type<tc>, window_params = [{transform_indices = @transform_0, window_bounds = array<i64: 1, 8, 32>}, {transform_indices = @transform_1, window_bounds = array<i64: 1, 8, 8>}, {transform_indices = @transform_2, window_bounds = array<i64: 1, 32, 96>}, {transform_indices = @transform_3, window_bounds = array<i64: 1, 1, 96>}, {transform_indices = @transform_4, window_bounds = array<i64: 1, 32, 32>}, {transform_indices = @transform_5, window_bounds = array<i64: 1, 1, 32>}, {transform_indices = @transform_6, window_bounds = array<i64: 1, 1, 32>}, {transform_indices = @transform_7, window_bounds = array<i64: 1, 1, 32>}, {transform_indices = @transform_8, window_bounds = array<i64: 1, 32, 64>}, {transform_indices = @transform_9, window_bounds = array<i64: 1, 1, 64>}, {transform_indices = @transform_10, window_bounds = array<i64: 1, 64, 32>}, {transform_indices = @transform_11, window_bounds = array<i64: 1, 1, 32>}, {transform_indices = @transform_12, window_bounds = array<i64: 1, 1, 32>}, {transform_indices = @transform_13, window_bounds = array<i64: 1, 1, 32>}, {transform_indices = @transform_14, window_bounds = array<i64: 1, 8, 32>}]} {
    %c0_i32 = arith.constant 0 : i32
    %0 = arith.cmpi eq, %arg1, %c0_i32 : i32
    %1 = arith.extui %0 : i1 to i32
    %c0_i32_0 = arith.constant 0 : i32
    %2 = arith.cmpi ne, %1, %c0_i32_0 : i32
    scf.if %2 {
      %c0_76 = arith.constant 0 : index
      %c0_77 = arith.constant 0 : index
      %c0_78 = arith.constant 0 : index
      %193 = vector.load %arg2[%c0_76, %c0_77, %c0_78] : memref<1x8x32xf32, #tpu.memory_space<vmem>>, vector<1x8x32xf32>
      %c0_79 = arith.constant 0 : index
      %c0_80 = arith.constant 0 : index
      %c0_81 = arith.constant 0 : index
      %194 = vector.load %arg17[%c0_79, %c0_80, %c0_81] : memref<1x8x32xf32, #tpu.memory_space<vmem>>, vector<1x8x32xf32>
      tpu.vector_store %arg17[%c0_79, %c0_80, %c0_81], %193 {strides = array<i32>} : memref<1x8x32xf32, #tpu.memory_space<vmem>>, vector<1x8x32xf32>,
    } else {
    }
    %c0 = arith.constant 0 : index
    %c0_1 = arith.constant 0 : index
    %c0_2 = arith.constant 0 : index
    %3 = vector.load %arg17[%c0, %c0_1, %c0_2] : memref<1x8x32xf32, #tpu.memory_space<vmem>>, vector<1x8x32xf32>
    %4 = vector.shape_cast %3 : vector<1x8x32xf32> to vector<8x32xf32>
    %5 = arith.truncf %4 : vector<8x32xf32> to vector<8x32xbf16>
    %c0_3 = arith.constant 0 : index
    %c0_4 = arith.constant 0 : index
    %c0_5 = arith.constant 0 : index
    %6 = vector.load %arg4[%c0_3, %c0_4, %c0_5] : memref<1x32x96xbf16, #tpu.memory_space<vmem>>, vector<1x32x96xbf16>
    %7 = vector.shape_cast %6 : vector<1x32x96xbf16> to vector<32x96xbf16>
    %cst = arith.constant dense<0.000000e+00> : vector<8x96xf32>
    %8 = tpu.matmul %5, %7, %cst {dimension_numbers = #tpu.dot_dimension_numbers<[1], [0], [0], [1], [0, 0, 1, 1], [], []>} : vector<8x32xbf16>, vector<32x96xbf16>, vector<8x96xf32> -> vector<8x96xf32>
    %c0_6 = arith.constant 0 : index
    %c0_7 = arith.constant 0 : index
    %c0_8 = arith.constant 0 : index
    %9 = vector.load %arg5[%c0_6, %c0_7, %c0_8] : memref<1x1x96xf32, #tpu.memory_space<vmem>>, vector<1x1x96xf32>
    %10 = vector.shape_cast %9 : vector<1x1x96xf32> to vector<1x96xf32>
    %11 = vector.broadcast %10 : vector<1x96xf32> to vector<8x96xf32>
    %12 = arith.addf %8, %11 : vector<8x96xf32>
    %13 = vector.extract_strided_slice %12 {offsets = [0, 0], sizes = [8, 32], strides = [1, 1]} : vector<8x96xf32> to vector<8x32xf32>
    %14 = vector.extract_strided_slice %12 {offsets = [0, 32], sizes = [8, 32], strides = [1, 1]} : vector<8x96xf32> to vector<8x32xf32>
    %15 = vector.extract_strided_slice %12 {offsets = [0, 64], sizes = [8, 32], strides = [1, 1]} : vector<8x96xf32> to vector<8x32xf32>
    %c0_9 = arith.constant 0 : index
    %c0_10 = arith.constant 0 : index
    %c0_11 = arith.constant 0 : index
    %16 = vector.load %arg3[%c0_9, %c0_10, %c0_11] : memref<1x8x8xbf16, #tpu.memory_space<vmem>>, vector<1x8x8xbf16>
    %17 = arith.extf %16 : vector<1x8x8xbf16> to vector<1x8x8xf32>
    %18 = vector.extract_strided_slice %13 {offsets = [0, 0], sizes = [8, 8], strides = [1, 1]} : vector<8x32xf32> to vector<8x8xf32>
    %19 = arith.truncf %18 : vector<8x8xf32> to vector<8x8xbf16>
    %20 = vector.shape_cast %19 : vector<8x8xbf16> to vector<1x8x8xbf16>
    %21 = vector.extract_strided_slice %14 {offsets = [0, 0], sizes = [8, 8], strides = [1, 1]} : vector<8x32xf32> to vector<8x8xf32>
    %22 = arith.truncf %21 : vector<8x8xf32> to vector<8x8xbf16>
    %23 = vector.shape_cast %22 : vector<8x8xbf16> to vector<1x8x8xbf16>
    %24 = vector.extract_strided_slice %15 {offsets = [0, 0], sizes = [8, 8], strides = [1, 1]} : vector<8x32xf32> to vector<8x8xf32>
    %25 = arith.truncf %24 : vector<8x8xf32> to vector<8x8xbf16>
    %26 = vector.shape_cast %25 : vector<8x8xbf16> to vector<1x8x8xbf16>
    "tpu.trace_start"() <{level = 10 : i32, message = "bqd,bkd->bqk"}> : () -> ()
    %cst_12 = arith.constant dense<0.000000e+00> : vector<1x8x8xf32>
    %27 = tpu.matmul %20, %23, %cst_12 {dimension_numbers = #tpu.dot_dimension_numbers<[2], [2], [1], [1], [0, 0, 0, 1, 1, 1], [0], [0]>} : vector<1x8x8xbf16>, vector<1x8x8xbf16>, vector<1x8x8xf32> -> vector<1x8x8xf32>
    "tpu.trace_stop"() : () -> ()
    %28 = arith.addf %27, %17 : vector<1x8x8xf32>
    %cst_13 = arith.constant dense<0xFF800000> : vector<1x8xf32>
    %29 = vector.multi_reduction <maximumf>, %28, %cst_13 [2] : vector<1x8x8xf32> to vector<1x8xf32>
    %30 = vector.shape_cast %29 : vector<1x8xf32> to vector<1x8x1xf32>
    %31 = vector.broadcast %30 : vector<1x8x1xf32> to vector<1x8x8xf32>
    %32 = arith.subf %28, %31 : vector<1x8x8xf32>
    %33 = math.exp %32 : vector<1x8x8xf32>
    %cst_14 = arith.constant dense<0.000000e+00> : vector<1x8xf32>
    %34 = vector.multi_reduction <add>, %33, %cst_14 [2] : vector<1x8x8xf32> to vector<1x8xf32>
    %35 = vector.shape_cast %34 : vector<1x8xf32> to vector<1x8x1xf32>
    %36 = vector.broadcast %35 : vector<1x8x1xf32> to vector<1x8x8xf32>
    %37 = arith.divf %33, %36 : vector<1x8x8xf32>
    %38 = arith.truncf %37 : vector<1x8x8xf32> to vector<1x8x8xbf16>
    "tpu.trace_start"() <{level = 10 : i32, message = "bqk,bkd->bqd"}> : () -> ()
    %cst_15 = arith.constant dense<0.000000e+00> : vector<1x8x8xf32>
    %39 = tpu.matmul %38, %26, %cst_15 {dimension_numbers = #tpu.dot_dimension_numbers<[2], [1], [1], [2], [0, 0, 0, 1, 1, 2], [0], [0]>} : vector<1x8x8xbf16>, vector<1x8x8xbf16>, vector<1x8x8xf32> -> vector<1x8x8xf32>
    "tpu.trace_stop"() : () -> ()
    %40 = vector.extract_strided_slice %13 {offsets = [0, 8], sizes = [8, 8], strides = [1, 1]} : vector<8x32xf32> to vector<8x8xf32>
    %41 = arith.truncf %40 : vector<8x8xf32> to vector<8x8xbf16>
    %42 = vector.shape_cast %41 : vector<8x8xbf16> to vector<1x8x8xbf16>
    %43 = vector.extract_strided_slice %14 {offsets = [0, 8], sizes = [8, 8], strides = [1, 1]} : vector<8x32xf32> to vector<8x8xf32>
    %44 = arith.truncf %43 : vector<8x8xf32> to vector<8x8xbf16>
    %45 = vector.shape_cast %44 : vector<8x8xbf16> to vector<1x8x8xbf16>
    %46 = vector.extract_strided_slice %15 {offsets = [0, 8], sizes = [8, 8], strides = [1, 1]} : vector<8x32xf32> to vector<8x8xf32>
    %47 = arith.truncf %46 : vector<8x8xf32> to vector<8x8xbf16>
    %48 = vector.shape_cast %47 : vector<8x8xbf16> to vector<1x8x8xbf16>
    "tpu.trace_start"() <{level = 10 : i32, message = "bqd,bkd->bqk"}> : () -> ()
    %cst_16 = arith.constant dense<0.000000e+00> : vector<1x8x8xf32>
    %49 = tpu.matmul %42, %45, %cst_16 {dimension_numbers = #tpu.dot_dimension_numbers<[2], [2], [1], [1], [0, 0, 0, 1, 1, 1], [0], [0]>} : vector<1x8x8xbf16>, vector<1x8x8xbf16>, vector<1x8x8xf32> -> vector<1x8x8xf32>
    "tpu.trace_stop"() : () -> ()
    %50 = arith.addf %49, %17 : vector<1x8x8xf32>
    %cst_17 = arith.constant dense<0xFF800000> : vector<1x8xf32>
    %51 = vector.multi_reduction <maximumf>, %50, %cst_17 [2] : vector<1x8x8xf32> to vector<1x8xf32>
    %52 = vector.shape_cast %51 : vector<1x8xf32> to vector<1x8x1xf32>
    %53 = vector.broadcast %52 : vector<1x8x1xf32> to vector<1x8x8xf32>
    %54 = arith.subf %50, %53 : vector<1x8x8xf32>
    %55 = math.exp %54 : vector<1x8x8xf32>
    %cst_18 = arith.constant dense<0.000000e+00> : vector<1x8xf32>
    %56 = vector.multi_reduction <add>, %55, %cst_18 [2] : vector<1x8x8xf32> to vector<1x8xf32>
    %57 = vector.shape_cast %56 : vector<1x8xf32> to vector<1x8x1xf32>
    %58 = vector.broadcast %57 : vector<1x8x1xf32> to vector<1x8x8xf32>
    %59 = arith.divf %55, %58 : vector<1x8x8xf32>
    %60 = arith.truncf %59 : vector<1x8x8xf32> to vector<1x8x8xbf16>
    "tpu.trace_start"() <{level = 10 : i32, message = "bqk,bkd->bqd"}> : () -> ()
    %cst_19 = arith.constant dense<0.000000e+00> : vector<1x8x8xf32>
    %61 = tpu.matmul %60, %48, %cst_19 {dimension_numbers = #tpu.dot_dimension_numbers<[2], [1], [1], [2], [0, 0, 0, 1, 1, 2], [0], [0]>} : vector<1x8x8xbf16>, vector<1x8x8xbf16>, vector<1x8x8xf32> -> vector<1x8x8xf32>
    "tpu.trace_stop"() : () -> ()
    %62 = vector.extract_strided_slice %13 {offsets = [0, 16], sizes = [8, 8], strides = [1, 1]} : vector<8x32xf32> to vector<8x8xf32>
    %63 = arith.truncf %62 : vector<8x8xf32> to vector<8x8xbf16>
    %64 = vector.shape_cast %63 : vector<8x8xbf16> to vector<1x8x8xbf16>
    %65 = vector.extract_strided_slice %14 {offsets = [0, 16], sizes = [8, 8], strides = [1, 1]} : vector<8x32xf32> to vector<8x8xf32>
    %66 = arith.truncf %65 : vector<8x8xf32> to vector<8x8xbf16>
    %67 = vector.shape_cast %66 : vector<8x8xbf16> to vector<1x8x8xbf16>
    %68 = vector.extract_strided_slice %15 {offsets = [0, 16], sizes = [8, 8], strides = [1, 1]} : vector<8x32xf32> to vector<8x8xf32>
    %69 = arith.truncf %68 : vector<8x8xf32> to vector<8x8xbf16>
    %70 = vector.shape_cast %69 : vector<8x8xbf16> to vector<1x8x8xbf16>
    "tpu.trace_start"() <{level = 10 : i32, message = "bqd,bkd->bqk"}> : () -> ()
    %cst_20 = arith.constant dense<0.000000e+00> : vector<1x8x8xf32>
    %71 = tpu.matmul %64, %67, %cst_20 {dimension_numbers = #tpu.dot_dimension_numbers<[2], [2], [1], [1], [0, 0, 0, 1, 1, 1], [0], [0]>} : vector<1x8x8xbf16>, vector<1x8x8xbf16>, vector<1x8x8xf32> -> vector<1x8x8xf32>
    "tpu.trace_stop"() : () -> ()
    %72 = arith.addf %71, %17 : vector<1x8x8xf32>
    %cst_21 = arith.constant dense<0xFF800000> : vector<1x8xf32>
    %73 = vector.multi_reduction <maximumf>, %72, %cst_21 [2] : vector<1x8x8xf32> to vector<1x8xf32>
    %74 = vector.shape_cast %73 : vector<1x8xf32> to vector<1x8x1xf32>
    %75 = vector.broadcast %74 : vector<1x8x1xf32> to vector<1x8x8xf32>
    %76 = arith.subf %72, %75 : vector<1x8x8xf32>
    %77 = math.exp %76 : vector<1x8x8xf32>
    %cst_22 = arith.constant dense<0.000000e+00> : vector<1x8xf32>
    %78 = vector.multi_reduction <add>, %77, %cst_22 [2] : vector<1x8x8xf32> to vector<1x8xf32>
    %79 = vector.shape_cast %78 : vector<1x8xf32> to vector<1x8x1xf32>
    %80 = vector.broadcast %79 : vector<1x8x1xf32> to vector<1x8x8xf32>
    %81 = arith.divf %77, %80 : vector<1x8x8xf32>
    %82 = arith.truncf %81 : vector<1x8x8xf32> to vector<1x8x8xbf16>
    "tpu.trace_start"() <{level = 10 : i32, message = "bqk,bkd->bqd"}> : () -> ()
    %cst_23 = arith.constant dense<0.000000e+00> : vector<1x8x8xf32>
    %83 = tpu.matmul %82, %70, %cst_23 {dimension_numbers = #tpu.dot_dimension_numbers<[2], [1], [1], [2], [0, 0, 0, 1, 1, 2], [0], [0]>} : vector<1x8x8xbf16>, vector<1x8x8xbf16>, vector<1x8x8xf32> -> vector<1x8x8xf32>
    "tpu.trace_stop"() : () -> ()
    %84 = vector.extract_strided_slice %13 {offsets = [0, 24], sizes = [8, 8], strides = [1, 1]} : vector<8x32xf32> to vector<8x8xf32>
    %85 = arith.truncf %84 : vector<8x8xf32> to vector<8x8xbf16>
    %86 = vector.shape_cast %85 : vector<8x8xbf16> to vector<1x8x8xbf16>
    %87 = vector.extract_strided_slice %14 {offsets = [0, 24], sizes = [8, 8], strides = [1, 1]} : vector<8x32xf32> to vector<8x8xf32>
    %88 = arith.truncf %87 : vector<8x8xf32> to vector<8x8xbf16>
    %89 = vector.shape_cast %88 : vector<8x8xbf16> to vector<1x8x8xbf16>
    %90 = vector.extract_strided_slice %15 {offsets = [0, 24], sizes = [8, 8], strides = [1, 1]} : vector<8x32xf32> to vector<8x8xf32>
    %91 = arith.truncf %90 : vector<8x8xf32> to vector<8x8xbf16>
    %92 = vector.shape_cast %91 : vector<8x8xbf16> to vector<1x8x8xbf16>
    "tpu.trace_start"() <{level = 10 : i32, message = "bqd,bkd->bqk"}> : () -> ()
    %cst_24 = arith.constant dense<0.000000e+00> : vector<1x8x8xf32>
    %93 = tpu.matmul %86, %89, %cst_24 {dimension_numbers = #tpu.dot_dimension_numbers<[2], [2], [1], [1], [0, 0, 0, 1, 1, 1], [0], [0]>} : vector<1x8x8xbf16>, vector<1x8x8xbf16>, vector<1x8x8xf32> -> vector<1x8x8xf32>
    "tpu.trace_stop"() : () -> ()
    %94 = arith.addf %93, %17 : vector<1x8x8xf32>
    %cst_25 = arith.constant dense<0xFF800000> : vector<1x8xf32>
    %95 = vector.multi_reduction <maximumf>, %94, %cst_25 [2] : vector<1x8x8xf32> to vector<1x8xf32>
    %96 = vector.shape_cast %95 : vector<1x8xf32> to vector<1x8x1xf32>
    %97 = vector.broadcast %96 : vector<1x8x1xf32> to vector<1x8x8xf32>
    %98 = arith.subf %94, %97 : vector<1x8x8xf32>
    %99 = math.exp %98 : vector<1x8x8xf32>
    %cst_26 = arith.constant dense<0.000000e+00> : vector<1x8xf32>
    %100 = vector.multi_reduction <add>, %99, %cst_26 [2] : vector<1x8x8xf32> to vector<1x8xf32>
    %101 = vector.shape_cast %100 : vector<1x8xf32> to vector<1x8x1xf32>
    %102 = vector.broadcast %101 : vector<1x8x1xf32> to vector<1x8x8xf32>
    %103 = arith.divf %99, %102 : vector<1x8x8xf32>
    %104 = arith.truncf %103 : vector<1x8x8xf32> to vector<1x8x8xbf16>
    "tpu.trace_start"() <{level = 10 : i32, message = "bqk,bkd->bqd"}> : () -> ()
    %cst_27 = arith.constant dense<0.000000e+00> : vector<1x8x8xf32>
    %105 = tpu.matmul %104, %92, %cst_27 {dimension_numbers = #tpu.dot_dimension_numbers<[2], [1], [1], [2], [0, 0, 0, 1, 1, 2], [0], [0]>} : vector<1x8x8xbf16>, vector<1x8x8xbf16>, vector<1x8x8xf32> -> vector<1x8x8xf32>
    "tpu.trace_stop"() : () -> ()
    %106 = tpu.concatenate %39, %61, %83, %105 in 2 : vector<1x8x8xf32>, vector<1x8x8xf32>, vector<1x8x8xf32>, vector<1x8x8xf32> -> vector<1x8x32xf32>
    %107 = vector.shape_cast %106 : vector<1x8x32xf32> to vector<8x32xf32>
    %108 = arith.truncf %107 : vector<8x32xf32> to vector<8x32xbf16>
    %c0_28 = arith.constant 0 : index
    %c0_29 = arith.constant 0 : index
    %c0_30 = arith.constant 0 : index
    %109 = vector.load %arg6[%c0_28, %c0_29, %c0_30] : memref<1x32x32xbf16, #tpu.memory_space<vmem>>, vector<1x32x32xbf16>
    %110 = vector.shape_cast %109 : vector<1x32x32xbf16> to vector<32x32xbf16>
    %cst_31 = arith.constant dense<0.000000e+00> : vector<8x32xf32>
    %111 = tpu.matmul %108, %110, %cst_31 {dimension_numbers = #tpu.dot_dimension_numbers<[1], [0], [0], [1], [0, 0, 1, 1], [], []>} : vector<8x32xbf16>, vector<32x32xbf16>, vector<8x32xf32> -> vector<8x32xf32>
    %c0_32 = arith.constant 0 : index
    %c0_33 = arith.constant 0 : index
    %c0_34 = arith.constant 0 : index
    %112 = vector.load %arg7[%c0_32, %c0_33, %c0_34] : memref<1x1x32xf32, #tpu.memory_space<vmem>>, vector<1x1x32xf32>
    %113 = vector.shape_cast %112 : vector<1x1x32xf32> to vector<1x32xf32>
    %114 = vector.broadcast %113 : vector<1x32xf32> to vector<8x32xf32>
    %115 = arith.addf %111, %114 : vector<8x32xf32>
    %116 = arith.addf %4, %115 : vector<8x32xf32>
    %c0_35 = arith.constant 0 : index
    %c0_36 = arith.constant 0 : index
    %c0_37 = arith.constant 0 : index
    %117 = vector.load %arg8[%c0_35, %c0_36, %c0_37] : memref<1x1x32xf32, #tpu.memory_space<vmem>>, vector<1x1x32xf32>
    %118 = vector.shape_cast %117 : vector<1x1x32xf32> to vector<1x32xf32>
    %c0_38 = arith.constant 0 : index
    %c0_39 = arith.constant 0 : index
    %c0_40 = arith.constant 0 : index
    %119 = vector.load %arg9[%c0_38, %c0_39, %c0_40] : memref<1x1x32xf32, #tpu.memory_space<vmem>>, vector<1x1x32xf32>
    %120 = vector.shape_cast %119 : vector<1x1x32xf32> to vector<1x32xf32>
    %cst_41 = arith.constant dense<0.000000e+00> : vector<8xf32>
    %121 = vector.multi_reduction <add>, %116, %cst_41 [1] : vector<8x32xf32> to vector<8xf32>
    %122 = vector.shape_cast %121 : vector<8xf32> to vector<8x1xf32>
    %cst_42 = arith.constant 3.200000e+01 : f32
    %123 = vector.broadcast %cst_42 : f32 to vector<8x1xf32>
    %124 = arith.divf %122, %123 : vector<8x1xf32>
    %125 = vector.broadcast %124 : vector<8x1xf32> to vector<8x32xf32>
    %126 = arith.subf %116, %125 : vector<8x32xf32>
    %127 = arith.mulf %126, %126 : vector<8x32xf32>
    %cst_43 = arith.constant dense<0.000000e+00> : vector<8xf32>
    %128 = vector.multi_reduction <add>, %127, %cst_43 [1] : vector<8x32xf32> to vector<8xf32>
    %129 = vector.shape_cast %128 : vector<8xf32> to vector<8x1xf32>
    %cst_44 = arith.constant 3.200000e+01 : f32
    %130 = vector.broadcast %cst_44 : f32 to vector<8x1xf32>
    %131 = arith.divf %129, %130 : vector<8x1xf32>
    %132 = vector.broadcast %124 : vector<8x1xf32> to vector<8x32xf32>
    %133 = arith.subf %116, %132 : vector<8x32xf32>
    %cst_45 = arith.constant 9.99999996E-13 : f32
    %134 = vector.broadcast %cst_45 : f32 to vector<8x1xf32>
    %135 = arith.addf %131, %134 : vector<8x1xf32>
    %136 = math.rsqrt %135 : vector<8x1xf32>
    %137 = vector.broadcast %136 : vector<8x1xf32> to vector<8x32xf32>
    %138 = arith.mulf %133, %137 : vector<8x32xf32>
    %139 = vector.broadcast %118 : vector<1x32xf32> to vector<8x32xf32>
    %140 = arith.mulf %139, %138 : vector<8x32xf32>
    %141 = vector.broadcast %120 : vector<1x32xf32> to vector<8x32xf32>
    %142 = arith.addf %140, %141 : vector<8x32xf32>
    %143 = arith.truncf %142 : vector<8x32xf32> to vector<8x32xbf16>
    %c0_46 = arith.constant 0 : index
    %c0_47 = arith.constant 0 : index
    %c0_48 = arith.constant 0 : index
    %144 = vector.load %arg10[%c0_46, %c0_47, %c0_48] : memref<1x32x64xbf16, #tpu.memory_space<vmem>>, vector<1x32x64xbf16>
    %145 = vector.shape_cast %144 : vector<1x32x64xbf16> to vector<32x64xbf16>
    %cst_49 = arith.constant dense<0.000000e+00> : vector<8x64xf32>
    %146 = tpu.matmul %143, %145, %cst_49 {dimension_numbers = #tpu.dot_dimension_numbers<[1], [0], [0], [1], [0, 0, 1, 1], [], []>} : vector<8x32xbf16>, vector<32x64xbf16>, vector<8x64xf32> -> vector<8x64xf32>
    %c0_50 = arith.constant 0 : index
    %c0_51 = arith.constant 0 : index
    %c0_52 = arith.constant 0 : index
    %147 = vector.load %arg11[%c0_50, %c0_51, %c0_52] : memref<1x1x64xf32, #tpu.memory_space<vmem>>, vector<1x1x64xf32>
    %148 = vector.shape_cast %147 : vector<1x1x64xf32> to vector<1x64xf32>
    %149 = vector.broadcast %148 : vector<1x64xf32> to vector<8x64xf32>
    %150 = arith.addf %146, %149 : vector<8x64xf32>
    %cst_53 = arith.constant 0.000000e+00 : f32
    %151 = vector.broadcast %cst_53 : f32 to vector<8x64xf32>
    %152 = arith.maximumf %150, %151 : vector<8x64xf32>
    %153 = arith.truncf %152 : vector<8x64xf32> to vector<8x64xbf16>
    %c0_54 = arith.constant 0 : index
    %c0_55 = arith.constant 0 : index
    %c0_56 = arith.constant 0 : index
    %154 = vector.load %arg12[%c0_54, %c0_55, %c0_56] : memref<1x64x32xbf16, #tpu.memory_space<vmem>>, vector<1x64x32xbf16>
    %155 = vector.shape_cast %154 : vector<1x64x32xbf16> to vector<64x32xbf16>
    %cst_57 = arith.constant dense<0.000000e+00> : vector<8x32xf32>
    %156 = tpu.matmul %153, %155, %cst_57 {dimension_numbers = #tpu.dot_dimension_numbers<[1], [0], [0], [1], [0, 0, 1, 1], [], []>} : vector<8x64xbf16>, vector<64x32xbf16>, vector<8x32xf32> -> vector<8x32xf32>
    %c0_58 = arith.constant 0 : index
    %c0_59 = arith.constant 0 : index
    %c0_60 = arith.constant 0 : index
    %157 = vector.load %arg13[%c0_58, %c0_59, %c0_60] : memref<1x1x32xf32, #tpu.memory_space<vmem>>, vector<1x1x32xf32>
    %158 = vector.shape_cast %157 : vector<1x1x32xf32> to vector<1x32xf32>
    %159 = vector.broadcast %158 : vector<1x32xf32> to vector<8x32xf32>
    %160 = arith.addf %156, %159 : vector<8x32xf32>
    %161 = arith.addf %142, %160 : vector<8x32xf32>
    %c0_61 = arith.constant 0 : index
    %c0_62 = arith.constant 0 : index
    %c0_63 = arith.constant 0 : index
    %162 = vector.load %arg14[%c0_61, %c0_62, %c0_63] : memref<1x1x32xf32, #tpu.memory_space<vmem>>, vector<1x1x32xf32>
    %163 = vector.shape_cast %162 : vector<1x1x32xf32> to vector<1x32xf32>
    %c0_64 = arith.constant 0 : index
    %c0_65 = arith.constant 0 : index
    %c0_66 = arith.constant 0 : index
    %164 = vector.load %arg15[%c0_64, %c0_65, %c0_66] : memref<1x1x32xf32, #tpu.memory_space<vmem>>, vector<1x1x32xf32>
    %165 = vector.shape_cast %164 : vector<1x1x32xf32> to vector<1x32xf32>
    %cst_67 = arith.constant dense<0.000000e+00> : vector<8xf32>
    %166 = vector.multi_reduction <add>, %161, %cst_67 [1] : vector<8x32xf32> to vector<8xf32>
    %167 = vector.shape_cast %166 : vector<8xf32> to vector<8x1xf32>
    %cst_68 = arith.constant 3.200000e+01 : f32
    %168 = vector.broadcast %cst_68 : f32 to vector<8x1xf32>
    %169 = arith.divf %167, %168 : vector<8x1xf32>
    %170 = vector.broadcast %169 : vector<8x1xf32> to vector<8x32xf32>
    %171 = arith.subf %161, %170 : vector<8x32xf32>
    %172 = arith.mulf %171, %171 : vector<8x32xf32>
    %cst_69 = arith.constant dense<0.000000e+00> : vector<8xf32>
    %173 = vector.multi_reduction <add>, %172, %cst_69 [1] : vector<8x32xf32> to vector<8xf32>
    %174 = vector.shape_cast %173 : vector<8xf32> to vector<8x1xf32>
    %cst_70 = arith.constant 3.200000e+01 : f32
    %175 = vector.broadcast %cst_70 : f32 to vector<8x1xf32>
    %176 = arith.divf %174, %175 : vector<8x1xf32>
    %177 = vector.broadcast %169 : vector<8x1xf32> to vector<8x32xf32>
    %178 = arith.subf %161, %177 : vector<8x32xf32>
    %cst_71 = arith.constant 9.99999996E-13 : f32
    %179 = vector.broadcast %cst_71 : f32 to vector<8x1xf32>
    %180 = arith.addf %176, %179 : vector<8x1xf32>
    %181 = math.rsqrt %180 : vector<8x1xf32>
    %182 = vector.broadcast %181 : vector<8x1xf32> to vector<8x32xf32>
    %183 = arith.mulf %178, %182 : vector<8x32xf32>
    %184 = vector.broadcast %163 : vector<1x32xf32> to vector<8x32xf32>
    %185 = arith.mulf %184, %183 : vector<8x32xf32>
    %186 = vector.broadcast %165 : vector<1x32xf32> to vector<8x32xf32>
    %187 = arith.addf %185, %186 : vector<8x32xf32>
    %188 = vector.shape_cast %187 : vector<8x32xf32> to vector<1x8x32xf32>
    %c0_72 = arith.constant 0 : index
    %c0_73 = arith.constant 0 : index
    %c0_74 = arith.constant 0 : index
    %189 = vector.load %arg17[%c0_72, %c0_73, %c0_74] : memref<1x8x32xf32, #tpu.memory_space<vmem>>, vector<1x8x32xf32>
    tpu.vector_store %arg17[%c0_72, %c0_73, %c0_74], %188 {strides = array<i32>} : memref<1x8x32xf32, #tpu.memory_space<vmem>>, vector<1x8x32xf32>,
    %c1_i32 = arith.constant 1 : i32
    %190 = arith.cmpi eq, %arg1, %c1_i32 : i32
    %191 = arith.extui %190 : i1 to i32
    %c0_i32_75 = arith.constant 0 : i32
    %192 = arith.cmpi ne, %191, %c0_i32_75 : i32
    scf.if %192 {
      %193 = vector.shape_cast %187 : vector<8x32xf32> to vector<1x8x32xf32>
      %c0_76 = arith.constant 0 : index
      %c0_77 = arith.constant 0 : index
      %c0_78 = arith.constant 0 : index
      %194 = vector.load %arg16[%c0_76, %c0_77, %c0_78] : memref<1x8x32xf32, #tpu.memory_space<vmem>>, vector<1x8x32xf32>
      tpu.vector_store %arg16[%c0_76, %c0_77, %c0_78], %193 {strides = array<i32>} : memref<1x8x32xf32, #tpu.memory_space<vmem>>, vector<1x8x32xf32>,
    } else {
    }
    return
  }
  func.func @transform_0(%arg0: i32, %arg1: i32) -> (i32, i32, i32) {
    %c0_i32 = arith.constant 0 : i32
    %c0_i32_0 = arith.constant 0 : i32
    %c0_i32_1 = arith.constant 0 : i32
    return %arg0, %c0_i32, %c0_i32_0 : i32, i32, i32
  }
  func.func @transform_1(%arg0: i32, %arg1: i32) -> (i32, i32, i32) {
    %c0_i32 = arith.constant 0 : i32
    %c0_i32_0 = arith.constant 0 : i32
    %c0_i32_1 = arith.constant 0 : i32
    return %arg0, %c0_i32, %c0_i32_0 : i32, i32, i32
  }
  func.func @transform_2(%arg0: i32, %arg1: i32) -> (i32, i32, i32) {
    %c0_i32 = arith.constant 0 : i32
    %c0_i32_0 = arith.constant 0 : i32
    %c0_i32_1 = arith.constant 0 : i32
    return %arg1, %c0_i32, %c0_i32_0 : i32, i32, i32
  }
  func.func @transform_3(%arg0: i32, %arg1: i32) -> (i32, i32, i32) {
    %c0_i32 = arith.constant 0 : i32
    %c0_i32_0 = arith.constant 0 : i32
    %c0_i32_1 = arith.constant 0 : i32
    return %arg1, %c0_i32, %c0_i32_0 : i32, i32, i32
  }
  func.func @transform_4(%arg0: i32, %arg1: i32) -> (i32, i32, i32) {
    %c0_i32 = arith.constant 0 : i32
    %c0_i32_0 = arith.constant 0 : i32
    %c0_i32_1 = arith.constant 0 : i32
    return %arg1, %c0_i32, %c0_i32_0 : i32, i32, i32
  }
  func.func @transform_5(%arg0: i32, %arg1: i32) -> (i32, i32, i32) {
    %c0_i32 = arith.constant 0 : i32
    %c0_i32_0 = arith.constant 0 : i32
    %c0_i32_1 = arith.constant 0 : i32
    return %arg1, %c0_i32, %c0_i32_0 : i32, i32, i32
  }
  func.func @transform_6(%arg0: i32, %arg1: i32) -> (i32, i32, i32) {
    %c0_i32 = arith.constant 0 : i32
    %c0_i32_0 = arith.constant 0 : i32
    %c0_i32_1 = arith.constant 0 : i32
    return %arg1, %c0_i32, %c0_i32_0 : i32, i32, i32
  }
  func.func @transform_7(%arg0: i32, %arg1: i32) -> (i32, i32, i32) {
    %c0_i32 = arith.constant 0 : i32
    %c0_i32_0 = arith.constant 0 : i32
    %c0_i32_1 = arith.constant 0 : i32
    return %arg1, %c0_i32, %c0_i32_0 : i32, i32, i32
  }
  func.func @transform_8(%arg0: i32, %arg1: i32) -> (i32, i32, i32) {
    %c0_i32 = arith.constant 0 : i32
    %c0_i32_0 = arith.constant 0 : i32
    %c0_i32_1 = arith.constant 0 : i32
    return %arg1, %c0_i32, %c0_i32_0 : i32, i32, i32
  }
  func.func @transform_9(%arg0: i32, %arg1: i32) -> (i32, i32, i32) {
    %c0_i32 = arith.constant 0 : i32
    %c0_i32_0 = arith.constant 0 : i32
    %c0_i32_1 = arith.constant 0 : i32
    return %arg1, %c0_i32, %c0_i32_0 : i32, i32, i32
  }
  func.func @transform_10(%arg0: i32, %arg1: i32) -> (i32, i32, i32) {
    %c0_i32 = arith.constant 0 : i32
    %c0_i32_0 = arith.constant 0 : i32
    %c0_i32_1 = arith.constant 0 : i32
    return %arg1, %c0_i32, %c0_i32_0 : i32, i32, i32
  }
  func.func @transform_11(%arg0: i32, %arg1: i32) -> (i32, i32, i32) {
    %c0_i32 = arith.constant 0 : i32
    %c0_i32_0 = arith.constant 0 : i32
    %c0_i32_1 = arith.constant 0 : i32
    return %arg1, %c0_i32, %c0_i32_0 : i32, i32, i32
  }
  func.func @transform_12(%arg0: i32, %arg1: i32) -> (i32, i32, i32) {
    %c0_i32 = arith.constant 0 : i32
    %c0_i32_0 = arith.constant 0 : i32
    %c0_i32_1 = arith.constant 0 : i32
    return %arg1, %c0_i32, %c0_i32_0 : i32, i32, i32
  }
  func.func @transform_13(%arg0: i32, %arg1: i32) -> (i32, i32, i32) {
    %c0_i32 = arith.constant 0 : i32
    %c0_i32_0 = arith.constant 0 : i32
    %c0_i32_1 = arith.constant 0 : i32
    return %arg1, %c0_i32, %c0_i32_0 : i32, i32, i32
  }
  func.func @transform_14(%arg0: i32, %arg1: i32) -> (i32, i32, i32) {
    %c0_i32 = arith.constant 0 : i32
    %c0_i32_0 = arith.constant 0 : i32
    %c0_i32_1 = arith.constant 0 : i32
    return %arg0, %c0_i32, %c0_i32_0 : i32, i32, i32
  }
}

</mosaic_0001>

<llo_original>
// kernel: tpu_custom_call.1
$region0: #{tpu_custom_call.1}
  #allocation0 [shape = 'u32[]', space=smem, size = 0x4, offset = 0x4, fixed_abs, tag = 'smem constant byte address 0x4 - core index']
  #allocation1 [shape = 'u32[72,128]{1,0:T(1,128)}', space=vmem, size = 0x9000, scoped, tag = 'internal scratch']
  #allocation2 [shape = 'f32[1,8,32]{2,1,0:T(8,128)}', space=vmem, size = 0x1000, scoped, tag = 'scratch operand']
  %s0 = inlined_call_operand.hbm [shape: f32[2,8,32], index: 0, kind: input, shape index: {}]
  %s1 = inlined_call_operand.hbm [shape: bf16[2,8,8], index: 1, kind: input, shape index: {}]
  %s2 = inlined_call_operand.vmem [shape: bf16[2,32,96], index: 2, kind: input, shape index: {}]
  %s3 = inlined_call_operand.hbm [shape: f32[2,1,96], index: 3, kind: input, shape index: {}]
  %s4 = inlined_call_operand.vmem [shape: bf16[2,32,32], index: 4, kind: input, shape index: {}]
  %s5 = inlined_call_operand.vmem [shape: f32[2,1,32], index: 5, kind: input, shape index: {}]
  %s6 = inlined_call_operand.vmem [shape: f32[2,1,32], index: 6, kind: input, shape index: {}]
  %s7 = inlined_call_operand.hbm [shape: f32[2,1,32], index: 7, kind: input, shape index: {}]
  %s8 = inlined_call_operand.vmem [shape: bf16[2,32,64], index: 8, kind: input, shape index: {}]
  %s9 = inlined_call_operand.vmem [shape: f32[2,1,64], index: 9, kind: input, shape index: {}]
  %s10 = inlined_call_operand.vmem [shape: bf16[2,64,32], index: 10, kind: input, shape index: {}]
  %s11 = inlined_call_operand.vmem [shape: f32[2,1,32], index: 11, kind: input, shape index: {}]
  %s12 = inlined_call_operand.vmem [shape: f32[2,1,32], index: 12, kind: input, shape index: {}]
  %s13 = inlined_call_operand.hbm [shape: f32[2,1,32], index: 13, kind: input, shape index: {}]
  %s14 = inlined_call_operand.hbm [shape: f32[2,8,32], index: 14, kind: output, shape index: {}]
  %s15 = sld [smem:[#allocation0]]
  $region117: #{tpu_custom_call.1} parent=0
    _
  %s17 = ssub.s32 1, %s15
  %s18 = scalar_select 0, %s17, %s15
  $region1: #{tpu_custom_call.1} parent=0
    #allocation3 [shape = 'u8[8192]{0}', space=vmem, size = 0x2000, scoped, tag = 'input window, operand 0']
    #allocation4 [shape = 's32[2]{0}', space=sflag, size = 0x8, scoped, tag = 'scoped memory for tpu_custom_call.1']
    #allocation5 [shape = 's32[2]{0}', space=sflag, size = 0x8, scoped, tag = 'scoped memory for tpu_custom_call.1']
    #allocation6 [shape = 'u8[4096]{0}', space=vmem, size = 0x1000, scoped, tag = 'input window, operand 1']
    #allocation7 [shape = 's32[2]{0}', space=sflag, size = 0x8, scoped, tag = 'scoped memory for tpu_custom_call.1']
    #allocation8 [shape = 'u8[1024]{0}', space=vmem, size = 0x400, scoped, tag = 'input window, operand 3']
    #allocation9 [shape = 'u8[1024]{0}', space=vmem, size = 0x400, scoped, tag = 'input window, operand 7']
    #allocation10 [shape = 's32[2]{0}', space=sflag, size = 0x8, scoped, tag = 'scoped memory for tpu_custom_call.1']
    #allocation11 [shape = 'u8[1024]{0}', space=vmem, size = 0x400, scoped, tag = 'input window, operand 13']
    #allocation12 [shape = 'u8[8192]{0}', space=vmem, size = 0x2000, scoped, tag = 'output window, operand 0']
    %19 = vsyncpa [#allocation4], 0
    %s20 = scalar_lea.sflag [#allocation4], 1
    %21 = vsyncpa %s20, 0
    %22 = vsyncpa [#allocation7], 0
    %s23 = scalar_lea.sflag [#allocation7], 1
    %24 = vsyncpa %s23, 0
    %25 = vsyncpa [#allocation10], 0
    %s26 = scalar_lea.sflag [#allocation10], 1
    %27 = vsyncpa %s26, 0
    %28 = vsyncpa [#allocation5], 0
    %s29 = scalar_lea.sflag [#allocation5], 1
    %30 = vsyncpa %s29, 0
    loop: start=0, step=1, limit=6
    $region2: #{tpu_custom_call.1} parent=1 // loop_pre_header
      _
    $region3: #{tpu_custom_call.1} parent=1 // loop_header
      %s32 = sphi 0, %s36
      %p33 = scmp.ge.s32.totalorder %s32, 6
      %s39 = sphi 0, %s51
      %s40 = sphi 0, %s47
      %s41 = sphi 0, %s39
      %s42 = sphi 0, %s40
      %s43 = sphi 0, %s41
      %s44 = sphi 0, %s42
      %s54 = sphi 0, %s56
      %s57 = sphi 0, %s54
      %s58 = sphi 0, %s57
      %s74 = sphi 0, %s58
      %s80 = sphi 0, %s82
      %s83 = sphi 0, %s80
      %s84 = sphi 0, %s83
      %s100 = sphi 0, %s84
      %s106 = sphi 0, %s108
      %s109 = sphi 0, %s106
      %s110 = sphi 0, %s109
      %s126 = sphi 0, %s110
      %s132 = sphi 0, %s134
      %s135 = sphi 0, %s132
      %s136 = sphi 0, %s135
      %s152 = sphi 0, %s136
      %s158 = sphi 0, %s160
      %s161 = sphi 0, %s158
      %s162 = sphi 0, %s161
      %s178 = sphi 0, %s162
      %s184 = sphi 0, %s186
      %s187 = sphi 0, %s184
      %s188 = sphi 0, %s187
      %s204 = sphi 0, %s188
      %s210 = sphi 0, %s212
      %s213 = sphi 0, %s210
      %s214 = sphi 0, %s213
      %s230 = sphi 0, %s214
      %s236 = sphi 0, %s238
      %s239 = sphi 0, %s236
      %s240 = sphi 0, %s239
      %s256 = sphi 0, %s240
      %s262 = sphi 0, %s264
      %s265 = sphi 0, %s262
      %s266 = sphi 0, %s265
      %s282 = sphi 0, %s266
      %s288 = sphi 0, %s290
      %s291 = sphi 0, %s288
      %s292 = sphi 0, %s291
      %s308 = sphi 0, %s292
      %s314 = sphi 0, %s316
      %s317 = sphi 0, %s314
      %s318 = sphi 0, %s317
      %s334 = sphi 0, %s318
      %s340 = sphi 0, %s342
      %s343 = sphi 0, %s340
      %s344 = sphi 0, %s343
      %s360 = sphi 0, %s344
      %s366 = sphi 0, %s368
      %s369 = sphi 0, %s366
      %s370 = sphi 0, %s369
      %s386 = sphi 0, %s370
      %s392 = sphi 0, %s394
      %s395 = sphi 0, %s392
      %s396 = sphi 0, %s395
      %s412 = sphi 0, %s396
      %s418 = sphi 0, %s420
      %s421 = sphi 0, %s418
      %s422 = sphi 0, %s421
      %s438 = sphi 0, %s422
    $region4: #{tpu_custom_call.1} parent=1 // loop_header_branch
      %35 = sbr.rel (%p33) target = $region8
    $region5: #{tpu_custom_call.1} parent=1 // loop_body
      %s37 = ssub.s32 %s32, 1
      %s38 = ssub.s32 %s32, 2
      %s45 = sadd.s32 1, %s40
      %p46 = scmp.ge.s32.totalorder %s45, 2
      %s47 = scalar_select %p46, 0, %s45
      %s48 = sadd.s32 1, %s39
      %s49 = scalar_select %p46, %s48, %s39
      %p50 = scmp.ge.s32.totalorder %s49, 2
      %s51 = scalar_select %p50, 0, %s49
      %s52 = ssub.s32 %s39, %s51
      %p53 = scmp.eq.s32.totalorder %s52, 0
      %s55 = sadd.s32 %s54, 1
      %s56 = scalar_select %p53, %s54, %s55
      %p59 = pneg %p53
      %p60 = scmp.eq.s32.totalorder %s32, 3
      %p61 = por %p59, %p60
      %p62 = scmp.ne.s32.totalorder %s54, %s57
      %p63 = scmp.eq.s32.totalorder %s32, 0
      %p64 = por %p62, %p63
      %p65 = scmp.ne.s32.totalorder %s54, %s57
      %p66 = scmp.eq.s32.totalorder %s37, 3
      %p67 = por %p65, %p66
      %p68 = scmp.ne.s32.totalorder %s57, %s58
      %p69 = scmp.eq.s32.totalorder %s37, 0
      %p70 = por %p68, %p69
      %p71 = scmp.ne.s32.totalorder %s57, %s58
      %p72 = scmp.eq.s32.totalorder %s38, 3
      %p73 = por %p71, %p72
      %p75 = scmp.ne.s32.totalorder %s58, %s74
      %p76 = scmp.eq.s32.totalorder %s38, 0
      %p77 = por %p75, %p76
      %s78 = ssub.s32 %s39, %s51
      %p79 = scmp.eq.s32.totalorder %s78, 0
      %s81 = sadd.s32 %s80, 1
      %s82 = scalar_select %p79, %s80, %s81
      %p85 = pneg %p79
      %p86 = scmp.eq.s32.totalorder %s32, 3
      %p87 = por %p85, %p86
      %p88 = scmp.ne.s32.totalorder %s80, %s83
      %p89 = scmp.eq.s32.totalorder %s32, 0
      %p90 = por %p88, %p89
      %p91 = scmp.ne.s32.totalorder %s80, %s83
      %p92 = scmp.eq.s32.totalorder %s37, 3
      %p93 = por %p91, %p92
      %p94 = scmp.ne.s32.totalorder %s83, %s84
      %p95 = scmp.eq.s32.totalorder %s37, 0
      %p96 = por %p94, %p95
      %p97 = scmp.ne.s32.totalorder %s83, %s84
      %p98 = scmp.eq.s32.totalorder %s38, 3
      %p99 = por %p97, %p98
      %p101 = scmp.ne.s32.totalorder %s84, %s100
      %p102 = scmp.eq.s32.totalorder %s38, 0
      %p103 = por %p101, %p102
      %s104 = ssub.s32 %s40, %s47
      %p105 = scmp.eq.s32.totalorder %s104, 0
      %s107 = sadd.s32 %s106, 1
      %s108 = scalar_select %p105, %s106, %s107
      %p111 = pneg %p105
      %p112 = scmp.eq.s32.totalorder %s32, 3
      %p113 = por %p111, %p112
      %p114 = scmp.ne.s32.totalorder %s106, %s109
      %p115 = scmp.eq.s32.totalorder %s32, 0
      %p116 = por %p114, %p115
      %p117 = scmp.ne.s32.totalorder %s106, %s109
      %p118 = scmp.eq.s32.totalorder %s37, 3
      %p119 = por %p117, %p118
      %p120 = scmp.ne.s32.totalorder %s109, %s110
      %p121 = scmp.eq.s32.totalorder %s37, 0
      %p122 = por %p120, %p121
      %p123 = scmp.ne.s32.totalorder %s109, %s110
      %p124 = scmp.eq.s32.totalorder %s38, 3
      %p125 = por %p123, %p124
      %p127 = scmp.ne.s32.totalorder %s110, %s126
      %p128 = scmp.eq.s32.totalorder %s38, 0
      %p129 = por %p127, %p128
      %s130 = ssub.s32 %s40, %s47
      %p131 = scmp.eq.s32.totalorder %s130, 0
      %s133 = sadd.s32 %s132, 1
      %s134 = scalar_select %p131, %s132, %s133
      %p137 = pneg %p131
      %p138 = scmp.eq.s32.totalorder %s32, 3
      %p139 = por %p137, %p138
      %p140 = scmp.ne.s32.totalorder %s132, %s135
      %p141 = scmp.eq.s32.totalorder %s32, 0
      %p142 = por %p140, %p141
      %p143 = scmp.ne.s32.totalorder %s132, %s135
      %p144 = scmp.eq.s32.totalorder %s37, 3
      %p145 = por %p143, %p144
      %p146 = scmp.ne.s32.totalorder %s135, %s136
      %p147 = scmp.eq.s32.totalorder %s37, 0
      %p148 = por %p146, %p147
      %p149 = scmp.ne.s32.totalorder %s135, %s136
      %p150 = scmp.eq.s32.totalorder %s38, 3
      %p151 = por %p149, %p150
      %p153 = scmp.ne.s32.totalorder %s136, %s152
      %p154 = scmp.eq.s32.totalorder %s38, 0
      %p155 = por %p153, %p154
      %s156 = ssub.s32 %s40, %s47
      %p157 = scmp.eq.s32.totalorder %s156, 0
      %s159 = sadd.s32 %s158, 1
      %s160 = scalar_select %p157, %s158, %s159
      %p163 = pneg %p157
      %p164 = scmp.eq.s32.totalorder %s32, 3
      %p165 = por %p163, %p164
      %p166 = scmp.ne.s32.totalorder %s158, %s161
      %p167 = scmp.eq.s32.totalorder %s32, 0
      %p168 = por %p166, %p167
      %p169 = scmp.ne.s32.totalorder %s158, %s161
      %p170 = scmp.eq.s32.totalorder %s37, 3
      %p171 = por %p169, %p170
      %p172 = scmp.ne.s32.totalorder %s161, %s162
      %p173 = scmp.eq.s32.totalorder %s37, 0
      %p174 = por %p172, %p173
      %p175 = scmp.ne.s32.totalorder %s161, %s162
      %p176 = scmp.eq.s32.totalorder %s38, 3
      %p177 = por %p175, %p176
      %p179 = scmp.ne.s32.totalorder %s162, %s178
      %p180 = scmp.eq.s32.totalorder %s38, 0
      %p181 = por %p179, %p180
      %s182 = ssub.s32 %s40, %s47
      %p183 = scmp.eq.s32.totalorder %s182, 0
      %s185 = sadd.s32 %s184, 1
      %s186 = scalar_select %p183, %s184, %s185
      %p189 = pneg %p183
      %p190 = scmp.eq.s32.totalorder %s32, 3
      %p191 = por %p189, %p190
      %p192 = scmp.ne.s32.totalorder %s184, %s187
      %p193 = scmp.eq.s32.totalorder %s32, 0
      %p194 = por %p192, %p193
      %p195 = scmp.ne.s32.totalorder %s184, %s187
      %p196 = scmp.eq.s32.totalorder %s37, 3
      %p197 = por %p195, %p196
      %p198 = scmp.ne.s32.totalorder %s187, %s188
      %p199 = scmp.eq.s32.totalorder %s37, 0
      %p200 = por %p198, %p199
      %p201 = scmp.ne.s32.totalorder %s187, %s188
      %p202 = scmp.eq.s32.totalorder %s38, 3
      %p203 = por %p201, %p202
      %p205 = scmp.ne.s32.totalorder %s188, %s204
      %p206 = scmp.eq.s32.totalorder %s38, 0
      %p207 = por %p205, %p206
      %s208 = ssub.s32 %s40, %s47
      %p209 = scmp.eq.s32.totalorder %s208, 0
      %s211 = sadd.s32 %s210, 1
      %s212 = scalar_select %p209, %s210, %s211
      %p215 = pneg %p209
      %p216 = scmp.eq.s32.totalorder %s32, 3
      %p217 = por %p215, %p216
      %p218 = scmp.ne.s32.totalorder %s210, %s213
      %p219 = scmp.eq.s32.totalorder %s32, 0
      %p220 = por %p218, %p219
      %p221 = scmp.ne.s32.totalorder %s210, %s213
      %p222 = scmp.eq.s32.totalorder %s37, 3
      %p223 = por %p221, %p222
      %p224 = scmp.ne.s32.totalorder %s213, %s214
      %p225 = scmp.eq.s32.totalorder %s37, 0
      %p226 = por %p224, %p225
      %p227 = scmp.ne.s32.totalorder %s213, %s214
      %p228 = scmp.eq.s32.totalorder %s38, 3
      %p229 = por %p227, %p228
      %p231 = scmp.ne.s32.totalorder %s214, %s230
      %p232 = scmp.eq.s32.totalorder %s38, 0
      %p233 = por %p231, %p232
      %s234 = ssub.s32 %s40, %s47
      %p235 = scmp.eq.s32.totalorder %s234, 0
      %s237 = sadd.s32 %s236, 1
      %s238 = scalar_select %p235, %s236, %s237
      %p241 = pneg %p235
      %p242 = scmp.eq.s32.totalorder %s32, 3
      %p243 = por %p241, %p242
      %p244 = scmp.ne.s32.totalorder %s236, %s239
      %p245 = scmp.eq.s32.totalorder %s32, 0
      %p246 = por %p244, %p245
      %p247 = scmp.ne.s32.totalorder %s236, %s239
      %p248 = scmp.eq.s32.totalorder %s37, 3
      %p249 = por %p247, %p248
      %p250 = scmp.ne.s32.totalorder %s239, %s240
      %p251 = scmp.eq.s32.totalorder %s37, 0
      %p252 = por %p250, %p251
      %p253 = scmp.ne.s32.totalorder %s239, %s240
      %p254 = scmp.eq.s32.totalorder %s38, 3
      %p255 = por %p253, %p254
      %p257 = scmp.ne.s32.totalorder %s240, %s256
      %p258 = scmp.eq.s32.totalorder %s38, 0
      %p259 = por %p257, %p258
      %s260 = ssub.s32 %s40, %s47
      %p261 = scmp.eq.s32.totalorder %s260, 0
      %s263 = sadd.s32 %s262, 1
      %s264 = scalar_select %p261, %s262, %s263
      %p267 = pneg %p261
      %p268 = scmp.eq.s32.totalorder %s32, 3
      %p269 = por %p267, %p268
      %p270 = scmp.ne.s32.totalorder %s262, %s265
      %p271 = scmp.eq.s32.totalorder %s32, 0
      %p272 = por %p270, %p271
      %p273 = scmp.ne.s32.totalorder %s262, %s265
      %p274 = scmp.eq.s32.totalorder %s37, 3
      %p275 = por %p273, %p274
      %p276 = scmp.ne.s32.totalorder %s265, %s266
      %p277 = scmp.eq.s32.totalorder %s37, 0
      %p278 = por %p276, %p277
      %p279 = scmp.ne.s32.totalorder %s265, %s266
      %p280 = scmp.eq.s32.totalorder %s38, 3
      %p281 = por %p279, %p280
      %p283 = scmp.ne.s32.totalorder %s266, %s282
      %p284 = scmp.eq.s32.totalorder %s38, 0
      %p285 = por %p283, %p284
      %s286 = ssub.s32 %s40, %s47
      %p287 = scmp.eq.s32.totalorder %s286, 0
      %s289 = sadd.s32 %s288, 1
      %s290 = scalar_select %p287, %s288, %s289
      %p293 = pneg %p287
      %p294 = scmp.eq.s32.totalorder %s32, 3
      %p295 = por %p293, %p294
      %p296 = scmp.ne.s32.totalorder %s288, %s291
      %p297 = scmp.eq.s32.totalorder %s32, 0
      %p298 = por %p296, %p297
      %p299 = scmp.ne.s32.totalorder %s288, %s291
      %p300 = scmp.eq.s32.totalorder %s37, 3
      %p301 = por %p299, %p300
      %p302 = scmp.ne.s32.totalorder %s291, %s292
      %p303 = scmp.eq.s32.totalorder %s37, 0
      %p304 = por %p302, %p303
      %p305 = scmp.ne.s32.totalorder %s291, %s292
      %p306 = scmp.eq.s32.totalorder %s38, 3
      %p307 = por %p305, %p306
      %p309 = scmp.ne.s32.totalorder %s292, %s308
      %p310 = scmp.eq.s32.totalorder %s38, 0
      %p311 = por %p309, %p310
      %s312 = ssub.s32 %s40, %s47
      %p313 = scmp.eq.s32.totalorder %s312, 0
      %s315 = sadd.s32 %s314, 1
      %s316 = scalar_select %p313, %s314, %s315
      %p319 = pneg %p313
      %p320 = scmp.eq.s32.totalorder %s32, 3
      %p321 = por %p319, %p320
      %p322 = scmp.ne.s32.totalorder %s314, %s317
      %p323 = scmp.eq.s32.totalorder %s32, 0
      %p324 = por %p322, %p323
      %p325 = scmp.ne.s32.totalorder %s314, %s317
      %p326 = scmp.eq.s32.totalorder %s37, 3
      %p327 = por %p325, %p326
      %p328 = scmp.ne.s32.totalorder %s317, %s318
      %p329 = scmp.eq.s32.totalorder %s37, 0
      %p330 = por %p328, %p329
      %p331 = scmp.ne.s32.totalorder %s317, %s318
      %p332 = scmp.eq.s32.totalorder %s38, 3
      %p333 = por %p331, %p332
      %p335 = scmp.ne.s32.totalorder %s318, %s334
      %p336 = scmp.eq.s32.totalorder %s38, 0
      %p337 = por %p335, %p336
      %s338 = ssub.s32 %s40, %s47
      %p339 = scmp.eq.s32.totalorder %s338, 0
      %s341 = sadd.s32 %s340, 1
      %s342 = scalar_select %p339, %s340, %s341
      %p345 = pneg %p339
      %p346 = scmp.eq.s32.totalorder %s32, 3
      %p347 = por %p345, %p346
      %p348 = scmp.ne.s32.totalorder %s340, %s343
      %p349 = scmp.eq.s32.totalorder %s32, 0
      %p350 = por %p348, %p349
      %p351 = scmp.ne.s32.totalorder %s340, %s343
      %p352 = scmp.eq.s32.totalorder %s37, 3
      %p353 = por %p351, %p352
      %p354 = scmp.ne.s32.totalorder %s343, %s344
      %p355 = scmp.eq.s32.totalorder %s37, 0
      %p356 = por %p354, %p355
      %p357 = scmp.ne.s32.totalorder %s343, %s344
      %p358 = scmp.eq.s32.totalorder %s38, 3
      %p359 = por %p357, %p358
      %p361 = scmp.ne.s32.totalorder %s344, %s360
      %p362 = scmp.eq.s32.totalorder %s38, 0
      %p363 = por %p361, %p362
      %s364 = ssub.s32 %s40, %s47
      %p365 = scmp.eq.s32.totalorder %s364, 0
      %s367 = sadd.s32 %s366, 1
      %s368 = scalar_select %p365, %s366, %s367
      %p371 = pneg %p365
      %p372 = scmp.eq.s32.totalorder %s32, 3
      %p373 = por %p371, %p372
      %p374 = scmp.ne.s32.totalorder %s366, %s369
      %p375 = scmp.eq.s32.totalorder %s32, 0
      %p376 = por %p374, %p375
      %p377 = scmp.ne.s32.totalorder %s366, %s369
      %p378 = scmp.eq.s32.totalorder %s37, 3
      %p379 = por %p377, %p378
      %p380 = scmp.ne.s32.totalorder %s369, %s370
      %p381 = scmp.eq.s32.totalorder %s37, 0
      %p382 = por %p380, %p381
      %p383 = scmp.ne.s32.totalorder %s369, %s370
      %p384 = scmp.eq.s32.totalorder %s38, 3
      %p385 = por %p383, %p384
      %p387 = scmp.ne.s32.totalorder %s370, %s386
      %p388 = scmp.eq.s32.totalorder %s38, 0
      %p389 = por %p387, %p388
      %s390 = ssub.s32 %s40, %s47
      %p391 = scmp.eq.s32.totalorder %s390, 0
      %s393 = sadd.s32 %s392, 1
      %s394 = scalar_select %p391, %s392, %s393
      %p397 = pneg %p391
      %p398 = scmp.eq.s32.totalorder %s32, 3
      %p399 = por %p397, %p398
      %p400 = scmp.ne.s32.totalorder %s392, %s395
      %p401 = scmp.eq.s32.totalorder %s32, 0
      %p402 = por %p400, %p401
      %p403 = scmp.ne.s32.totalorder %s392, %s395
      %p404 = scmp.eq.s32.totalorder %s37, 3
      %p405 = por %p403, %p404
      %p406 = scmp.ne.s32.totalorder %s395, %s396
      %p407 = scmp.eq.s32.totalorder %s37, 0
      %p408 = por %p406, %p407
      %p409 = scmp.ne.s32.totalorder %s395, %s396
      %p410 = scmp.eq.s32.totalorder %s38, 3
      %p411 = por %p409, %p410
      %p413 = scmp.ne.s32.totalorder %s396, %s412
      %p414 = scmp.eq.s32.totalorder %s38, 0
      %p415 = por %p413, %p414
      %s416 = ssub.s32 %s39, %s51
      %p417 = scmp.eq.s32.totalorder %s416, 0
      %s419 = sadd.s32 %s418, 1
      %s420 = scalar_select %p417, %s418, %s419
      %p423 = pneg %p417
      %p424 = scmp.eq.s32.totalorder %s32, 3
      %p425 = por %p423, %p424
      %p426 = scmp.ne.s32.totalorder %s418, %s421
      %p427 = scmp.eq.s32.totalorder %s32, 0
      %p428 = por %p426, %p427
      %p429 = scmp.ne.s32.totalorder %s418, %s421
      %p430 = scmp.eq.s32.totalorder %s37, 3
      %p431 = por %p429, %p430
      %p432 = scmp.ne.s32.totalorder %s421, %s422
      %p433 = scmp.eq.s32.totalorder %s37, 0
      %p434 = por %p432, %p433
      %p435 = scmp.ne.s32.totalorder %s421, %s422
      %p436 = scmp.eq.s32.totalorder %s38, 3
      %p437 = por %p435, %p436
      %p439 = scmp.ne.s32.totalorder %s422, %s438
      %p440 = scmp.eq.s32.totalorder %s38, 0
      %p441 = por %p439, %p440
      %p442 = scmp.le.s32.totalorder 1, %s32
      %p443 = scmp.lt.s32.totalorder %s32, 5
      %p444 = pnand %p442, %p443
      %p445 = pneg %p444
      // Predicated region
      $region9: #{tpu_custom_call.1} parent=5 // pred_check
        _
      $region10: #{tpu_custom_call.1} parent=5 // pred_check_branch
        %447 = sbr.rel (%p444) target = $region12
      $region11: #{tpu_custom_call.1} parent=5 // pred_region
        %s448 = ssub.s32 %s32, 1
      $region12: #{tpu_custom_call.1} parent=5 // pred_fallthru
        _
      %p449 = scmp.lt.s32.totalorder %s32, 4
      // Predicated region
      $region13: #{tpu_custom_call.1} parent=5 // pred_check
        %p450 = pneg %p449
      $region14: #{tpu_custom_call.1} parent=5 // pred_check_branch
        %452 = sbr.rel (%p450) target = $region16
      $region15: #{tpu_custom_call.1} parent=5 // pred_region
        // Predicated region
        $region17: #{tpu_custom_call.1} parent=15 // pred_check
          %p453 = pneg %p64
        $region18: #{tpu_custom_call.1} parent=15 // pred_check_branch
          %455 = sbr.rel (%p453) target = $region20
        $region19: #{tpu_custom_call.1} parent=15 // pred_region
          %s456 = sand.u32 %s54, 1
          %s457 = scalar_lea.sflag [#allocation4], %s456
          %s458 = sand.u32 %s54, 1
          %s459 = smul.addr %s458, 8
          %s460 = scalar_lea.vmem [#allocation3], %s459
          %462 = vsyncadd %s457, 0
          %s463 = smul.addr %s39, 8
          %s464 = scalar_lea.hbm %s0, %s463
          %s466 = sshll.u32 %s464, 4
          %s467 = int_to_ptr.hbm [resolvable:$true] %s466
          %s468 = sshll.u32 %s460, 4
          %s469 = int_to_ptr.vmem [resolvable:$true] %s468
          %471 = dma.hbm_to_vmem [thread:$0]  %s467, 128, %s469, %s457
        $region20: #{tpu_custom_call.1} parent=15 // pred_fallthru
          _
        // Predicated region
        $region21: #{tpu_custom_call.1} parent=15 // pred_check
          %p472 = pneg %p90
        $region22: #{tpu_custom_call.1} parent=15 // pred_check_branch
          %474 = sbr.rel (%p472) target = $region24
        $region23: #{tpu_custom_call.1} parent=15 // pred_region
          %s475 = sand.u32 %s32, 1
          %s476 = scalar_lea.sflag [#allocation7], %s475
          %s477 = sand.u32 %s80, 1
          %s478 = smul.addr %s477, 4
          %s479 = scalar_lea.vmem [#allocation6], %s478
          %481 = vsyncadd %s476, 0
          %s482 = smul.addr %s39, 4
          %s483 = scalar_lea.hbm %s1, %s482
          %s485 = sshll.u32 %s483, 4
          %s486 = int_to_ptr.hbm [resolvable:$true] %s485
          %s487 = sshll.u32 %s479, 4
          %s488 = int_to_ptr.vmem [resolvable:$true] %s487
          %490 = dma.hbm_to_vmem [thread:$0]  %s486, 64, %s488, %s476
        $region24: #{tpu_custom_call.1} parent=15 // pred_fallthru
          _
        // Predicated region
        $region25: #{tpu_custom_call.1} parent=15 // pred_check
          %p491 = pneg %p116
        $region26: #{tpu_custom_call.1} parent=15 // pred_check_branch
          %493 = sbr.rel (%p491) target = $region28
        $region27: #{tpu_custom_call.1} parent=15 // pred_region
          %p494 = scmp.lt.s32.totalorder %s40, 1
          %s495 = scalar_select %p494, %s40, 1
          %s496 = smul.addr %s495, 4
          %s497 = smul.addr %s496, 4
          %s498 = scalar_lea.vmem %s2, %s497
        $region28: #{tpu_custom_call.1} parent=15 // pred_fallthru
          _
        // Predicated region
        $region29: #{tpu_custom_call.1} parent=15 // pred_check
          %p499 = pneg %p142
        $region30: #{tpu_custom_call.1} parent=15 // pred_check_branch
          %501 = sbr.rel (%p499) target = $region32
        $region31: #{tpu_custom_call.1} parent=15 // pred_region
          %s502 = sand.u32 %s32, 1
          %s503 = scalar_lea.sflag [#allocation7], %s502
          %s504 = sand.u32 %s132, 1
          %s505 = scalar_lea.vmem [#allocation8], %s504
          %507 = vsyncadd %s503, 0
          %s508 = scalar_lea.hbm %s3, %s40
          %s510 = sshll.u32 %s508, 4
          %s511 = int_to_ptr.hbm [resolvable:$true] %s510
          %s512 = sshll.u32 %s505, 4
          %s513 = int_to_ptr.vmem [resolvable:$true] %s512
          %515 = dma.hbm_to_vmem [thread:$0]  %s511, 16, %s513, %s503
        $region32: #{tpu_custom_call.1} parent=15 // pred_fallthru
          _
        // Predicated region
        $region33: #{tpu_custom_call.1} parent=15 // pred_check
          %p516 = pneg %p168
        $region34: #{tpu_custom_call.1} parent=15 // pred_check_branch
          %518 = sbr.rel (%p516) target = $region36
        $region35: #{tpu_custom_call.1} parent=15 // pred_region
          %p519 = scmp.lt.s32.totalorder %s40, 1
          %s520 = scalar_select %p519, %s40, 1
          %s521 = smul.addr %s520, 4
          %s522 = smul.addr %s521, 4
          %s523 = scalar_lea.vmem %s4, %s522
        $region36: #{tpu_custom_call.1} parent=15 // pred_fallthru
          _
        // Predicated region
        $region37: #{tpu_custom_call.1} parent=15 // pred_check
          %p524 = pneg %p194
        $region38: #{tpu_custom_call.1} parent=15 // pred_check_branch
          %526 = sbr.rel (%p524) target = $region40
        $region39: #{tpu_custom_call.1} parent=15 // pred_region
          %p527 = scmp.lt.s32.totalorder %s40, 1
          %s528 = scalar_select %p527, %s40, 1
          %s529 = scalar_lea.vmem %s5, %s528
        $region40: #{tpu_custom_call.1} parent=15 // pred_fallthru
          _
        // Predicated region
        $region41: #{tpu_custom_call.1} parent=15 // pred_check
          %p530 = pneg %p220
        $region42: #{tpu_custom_call.1} parent=15 // pred_check_branch
          %532 = sbr.rel (%p530) target = $region44
        $region43: #{tpu_custom_call.1} parent=15 // pred_region
          %p533 = scmp.lt.s32.totalorder %s40, 1
          %s534 = scalar_select %p533, %s40, 1
          %s535 = scalar_lea.vmem %s6, %s534
        $region44: #{tpu_custom_call.1} parent=15 // pred_fallthru
          _
        // Predicated region
        $region45: #{tpu_custom_call.1} parent=15 // pred_check
          %p536 = pneg %p246
        $region46: #{tpu_custom_call.1} parent=15 // pred_check_branch
          %538 = sbr.rel (%p536) target = $region48
        $region47: #{tpu_custom_call.1} parent=15 // pred_region
          %s539 = sand.u32 %s32, 1
          %s540 = scalar_lea.sflag [#allocation10], %s539
          %s541 = sand.u32 %s236, 1
          %s542 = scalar_lea.vmem [#allocation9], %s541
          %544 = vsyncadd %s540, 0
          %s545 = scalar_lea.hbm %s7, %s40
          %s547 = sshll.u32 %s545, 4
          %s548 = int_to_ptr.hbm [resolvable:$true] %s547
          %s549 = sshll.u32 %s542, 4
          %s550 = int_to_ptr.vmem [resolvable:$true] %s549
          %552 = dma.hbm_to_vmem [thread:$0]  %s548, 16, %s550, %s540
        $region48: #{tpu_custom_call.1} parent=15 // pred_fallthru
          _
        // Predicated region
        $region49: #{tpu_custom_call.1} parent=15 // pred_check
          %p553 = pneg %p272
        $region50: #{tpu_custom_call.1} parent=15 // pred_check_branch
          %555 = sbr.rel (%p553) target = $region52
        $region51: #{tpu_custom_call.1} parent=15 // pred_region
          %p556 = scmp.lt.s32.totalorder %s40, 1
          %s557 = scalar_select %p556, %s40, 1
          %s558 = smul.addr %s557, 4
          %s559 = smul.addr %s558, 4
          %s560 = scalar_lea.vmem %s8, %s559
        $region52: #{tpu_custom_call.1} parent=15 // pred_fallthru
          _
        // Predicated region
        $region53: #{tpu_custom_call.1} parent=15 // pred_check
          %p561 = pneg %p298
        $region54: #{tpu_custom_call.1} parent=15 // pred_check_branch
          %563 = sbr.rel (%p561) target = $region56
        $region55: #{tpu_custom_call.1} parent=15 // pred_region
          %p564 = scmp.lt.s32.totalorder %s40, 1
          %s565 = scalar_select %p564, %s40, 1
          %s566 = scalar_lea.vmem %s9, %s565
        $region56: #{tpu_custom_call.1} parent=15 // pred_fallthru
          _
        // Predicated region
        $region57: #{tpu_custom_call.1} parent=15 // pred_check
          %p567 = pneg %p324
        $region58: #{tpu_custom_call.1} parent=15 // pred_check_branch
          %569 = sbr.rel (%p567) target = $region60
        $region59: #{tpu_custom_call.1} parent=15 // pred_region
          %p570 = scmp.lt.s32.totalorder %s40, 1
          %s571 = scalar_select %p570, %s40, 1
          %s572 = smul.addr %s571, 8
          %s573 = smul.addr %s572, 4
          %s574 = scalar_lea.vmem %s10, %s573
        $region60: #{tpu_custom_call.1} parent=15 // pred_fallthru
          _
        // Predicated region
        $region61: #{tpu_custom_call.1} parent=15 // pred_check
          %p575 = pneg %p350
        $region62: #{tpu_custom_call.1} parent=15 // pred_check_branch
          %577 = sbr.rel (%p575) target = $region64
        $region63: #{tpu_custom_call.1} parent=15 // pred_region
          %p578 = scmp.lt.s32.totalorder %s40, 1
          %s579 = scalar_select %p578, %s40, 1
          %s580 = scalar_lea.vmem %s11, %s579
        $region64: #{tpu_custom_call.1} parent=15 // pred_fallthru
          _
        // Predicated region
        $region65: #{tpu_custom_call.1} parent=15 // pred_check
          %p581 = pneg %p376
        $region66: #{tpu_custom_call.1} parent=15 // pred_check_branch
          %583 = sbr.rel (%p581) target = $region68
        $region67: #{tpu_custom_call.1} parent=15 // pred_region
          %p584 = scmp.lt.s32.totalorder %s40, 1
          %s585 = scalar_select %p584, %s40, 1
          %s586 = scalar_lea.vmem %s12, %s585
        $region68: #{tpu_custom_call.1} parent=15 // pred_fallthru
          _
        // Predicated region
        $region69: #{tpu_custom_call.1} parent=15 // pred_check
          %p587 = pneg %p402
        $region70: #{tpu_custom_call.1} parent=15 // pred_check_branch
          %589 = sbr.rel (%p587) target = $region72
        $region71: #{tpu_custom_call.1} parent=15 // pred_region
          %s590 = sand.u32 %s32, 1
          %s591 = scalar_lea.sflag [#allocation10], %s590
          %s592 = sand.u32 %s392, 1
          %s593 = scalar_lea.vmem [#allocation11], %s592
          %595 = vsyncadd %s591, 0
          %s596 = scalar_lea.hbm %s13, %s40
          %s598 = sshll.u32 %s596, 4
          %s599 = int_to_ptr.hbm [resolvable:$true] %s598
          %s600 = sshll.u32 %s593, 4
          %s601 = int_to_ptr.vmem [resolvable:$true] %s600
          %603 = dma.hbm_to_vmem [thread:$0]  %s599, 16, %s601, %s591
        $region72: #{tpu_custom_call.1} parent=15 // pred_fallthru
          _
      $region16: #{tpu_custom_call.1} parent=5 // pred_fallthru
        _
      %p604 = scmp.le.s32.totalorder 1, %s32
      %p605 = scmp.lt.s32.totalorder %s32, 5
      %p606 = pnand %p604, %p605
      %p607 = pneg %p606
      // Predicated region
      $region73: #{tpu_custom_call.1} parent=5 // pred_check
        _
      $region74: #{tpu_custom_call.1} parent=5 // pred_check_branch
        %609 = sbr.rel (%p606) target = $region76
      $region75: #{tpu_custom_call.1} parent=5 // pred_region
        %s610 = ssub.s32 %s32, 1
        %s611 = sand.u32 %s57, 1
        %s612 = scalar_lea.sflag [#allocation4], %s611
        %s613 = sand.u32 %s57, 1
        %s614 = smul.addr %s613, 8
        %s615 = scalar_lea.vmem [#allocation3], %s614
        // Predicated region
        $region77: #{tpu_custom_call.1} parent=75 // pred_check
          %p616 = pneg %p70
        $region78: #{tpu_custom_call.1} parent=75 // pred_check_branch
          %618 = sbr.rel (%p616) target = $region80
        $region79: #{tpu_custom_call.1} parent=75 // pred_region
          %620 = dma.done %s612, 128
        $region80: #{tpu_custom_call.1} parent=75 // pred_fallthru
          _
        %s621 = sand.u32 %s37, 1
        %s622 = scalar_lea.sflag [#allocation7], %s621
        %s623 = sand.u32 %s83, 1
        %s624 = smul.addr %s623, 4
        %s625 = scalar_lea.vmem [#allocation6], %s624
        // Predicated region
        $region81: #{tpu_custom_call.1} parent=75 // pred_check
          %p626 = pneg %p96
        $region82: #{tpu_custom_call.1} parent=75 // pred_check_branch
          %628 = sbr.rel (%p626) target = $region84
        $region83: #{tpu_custom_call.1} parent=75 // pred_region
          %630 = dma.done %s622, 64
        $region84: #{tpu_custom_call.1} parent=75 // pred_fallthru
          _
        %s631 = sand.u32 %s37, 1
        %s632 = scalar_lea.sflag [#allocation7], %s631
        %s633 = sand.u32 %s135, 1
        %s634 = scalar_lea.vmem [#allocation8], %s633
        // Predicated region
        $region85: #{tpu_custom_call.1} parent=75 // pred_check
          %p635 = pneg %p148
        $region86: #{tpu_custom_call.1} parent=75 // pred_check_branch
          %637 = sbr.rel (%p635) target = $region88
        $region87: #{tpu_custom_call.1} parent=75 // pred_region
          %639 = dma.done %s632, 16
        $region88: #{tpu_custom_call.1} parent=75 // pred_fallthru
          _
        %s640 = sand.u32 %s37, 1
        %s641 = scalar_lea.sflag [#allocation10], %s640
        %s642 = sand.u32 %s239, 1
        %s643 = scalar_lea.vmem [#allocation9], %s642
        // Predicated region
        $region89: #{tpu_custom_call.1} parent=75 // pred_check
          %p644 = pneg %p252
        $region90: #{tpu_custom_call.1} parent=75 // pred_check_branch
          %646 = sbr.rel (%p644) target = $region92
        $region91: #{tpu_custom_call.1} parent=75 // pred_region
          %648 = dma.done %s641, 16
        $region92: #{tpu_custom_call.1} parent=75 // pred_fallthru
          _
        %s649 = sand.u32 %s37, 1
        %s650 = scalar_lea.sflag [#allocation10], %s649
        %s651 = sand.u32 %s395, 1
        %s652 = scalar_lea.vmem [#allocation11], %s651
        // Predicated region
        $region93: #{tpu_custom_call.1} parent=75 // pred_check
          %p653 = pneg %p408
        $region94: #{tpu_custom_call.1} parent=75 // pred_check_branch
          %655 = sbr.rel (%p653) target = $region96
        $region95: #{tpu_custom_call.1} parent=75 // pred_region
          %657 = dma.done %s650, 16
        $region96: #{tpu_custom_call.1} parent=75 // pred_fallthru
          _
        %s658 = sand.u32 %s57, 1
        %s659 = scalar_lea.sflag [#allocation4], %s658
        %s660 = sand.u32 %s57, 1
        %s661 = smul.addr %s660, 8
        %s662 = scalar_lea.vmem [#allocation3], %s661
        %p663 = pneg %p70
        %p664 = pneg %p67
        %s665 = sand.u32 %s37, 1
        %s666 = scalar_lea.sflag [#allocation7], %s665
        %s667 = sand.u32 %s83, 1
        %s668 = smul.addr %s667, 4
        %s669 = scalar_lea.vmem [#allocation6], %s668
        %p670 = pneg %p96
        %p671 = pneg %p93
        %p672 = scmp.lt.s32.totalorder %s42, 1
        %s673 = scalar_select %p672, %s42, 1
        %s674 = smul.addr %s673, 4
        %s675 = smul.addr %s674, 4
        %s676 = scalar_lea.vmem %s2, %s675
        %p677 = pneg %p122
        %p678 = pneg %p119
        %s679 = sand.u32 %s37, 1
        %s680 = scalar_lea.sflag [#allocation7], %s679
        %s681 = sand.u32 %s135, 1
        %s682 = scalar_lea.vmem [#allocation8], %s681
        %p683 = pneg %p148
        %p684 = pneg %p145
        %p685 = scmp.lt.s32.totalorder %s42, 1
        %s686 = scalar_select %p685, %s42, 1
        %s687 = smul.addr %s686, 4
        %s688 = smul.addr %s687, 4
        %s689 = scalar_lea.vmem %s4, %s688
        %p690 = pneg %p174
        %p691 = pneg %p171
        %p692 = scmp.lt.s32.totalorder %s42, 1
        %s693 = scalar_select %p692, %s42, 1
        %s694 = scalar_lea.vmem %s5, %s693
        %p695 = pneg %p200
        %p696 = pneg %p197
        %p697 = scmp.lt.s32.totalorder %s42, 1
        %s698 = scalar_select %p697, %s42, 1
        %s699 = scalar_lea.vmem %s6, %s698
        %p700 = pneg %p226
        %p701 = pneg %p223
        %s702 = sand.u32 %s37, 1
        %s703 = scalar_lea.sflag [#allocation10], %s702
        %s704 = sand.u32 %s239, 1
        %s705 = scalar_lea.vmem [#allocation9], %s704
        %p706 = pneg %p252
        %p707 = pneg %p249
        %p708 = scmp.lt.s32.totalorder %s42, 1
        %s709 = scalar_select %p708, %s42, 1
        %s710 = smul.addr %s709, 4
        %s711 = smul.addr %s710, 4
        %s712 = scalar_lea.vmem %s8, %s711
        %p713 = pneg %p278
        %p714 = pneg %p275
        %p715 = scmp.lt.s32.totalorder %s42, 1
        %s716 = scalar_select %p715, %s42, 1
        %s717 = scalar_lea.vmem %s9, %s716
        %p718 = pneg %p304
        %p719 = pneg %p301
        %p720 = scmp.lt.s32.totalorder %s42, 1
        %s721 = scalar_select %p720, %s42, 1
        %s722 = smul.addr %s721, 8
        %s723 = smul.addr %s722, 4
        %s724 = scalar_lea.vmem %s10, %s723
        %p725 = pneg %p330
        %p726 = pneg %p327
        %p727 = scmp.lt.s32.totalorder %s42, 1
        %s728 = scalar_select %p727, %s42, 1
        %s729 = scalar_lea.vmem %s11, %s728
        %p730 = pneg %p356
        %p731 = pneg %p353
        %p732 = scmp.lt.s32.totalorder %s42, 1
        %s733 = scalar_select %p732, %s42, 1
        %s734 = scalar_lea.vmem %s12, %s733
        %p735 = pneg %p382
        %p736 = pneg %p379
        %s737 = sand.u32 %s37, 1
        %s738 = scalar_lea.sflag [#allocation10], %s737
        %s739 = sand.u32 %s395, 1
        %s740 = scalar_lea.vmem [#allocation11], %s739
        %p741 = pneg %p408
        %p742 = pneg %p405
        %p743 = pneg %p434
        %p744 = pneg %p431
        %s745 = sand.u32 %s421, 1
        %s746 = scalar_lea.sflag [#allocation5], %s745
        %s747 = sand.u32 %s421, 1
        %s748 = smul.addr %s747, 8
        %s749 = scalar_lea.vmem [#allocation12], %s748
        %p750 = scmp.lt.s32.totalorder %s42, 1
        %s751 = scalar_select %p750, %s42, 1
        %s752 = smul.addr %s751, 4
        %s753 = smul.addr %s752, 4
        %s754 = scalar_lea.vmem %s2, %s753
        %p755 = scmp.lt.s32.totalorder %s42, 1
        %s756 = scalar_select %p755, %s42, 1
        %s757 = smul.addr %s756, 4
        %s758 = smul.addr %s757, 4
        %s759 = scalar_lea.vmem %s4, %s758
        %p760 = scmp.lt.s32.totalorder %s42, 1
        %s761 = scalar_select %p760, %s42, 1
        %s762 = scalar_lea.vmem %s5, %s761
        %p763 = scmp.lt.s32.totalorder %s42, 1
        %s764 = scalar_select %p763, %s42, 1
        %s765 = scalar_lea.vmem %s6, %s764
        %p766 = scmp.lt.s32.totalorder %s42, 1
        %s767 = scalar_select %p766, %s42, 1
        %s768 = smul.addr %s767, 4
        %s769 = smul.addr %s768, 4
        %s770 = scalar_lea.vmem %s8, %s769
        %p771 = scmp.lt.s32.totalorder %s42, 1
        %s772 = scalar_select %p771, %s42, 1
        %s773 = scalar_lea.vmem %s9, %s772
        %p774 = scmp.lt.s32.totalorder %s42, 1
        %s775 = scalar_select %p774, %s42, 1
        %s776 = smul.addr %s775, 8
        %s777 = smul.addr %s776, 4
        %s778 = scalar_lea.vmem %s10, %s777
        %p779 = scmp.lt.s32.totalorder %s42, 1
        %s780 = scalar_select %p779, %s42, 1
        %s781 = scalar_lea.vmem %s11, %s780
        %p782 = scmp.lt.s32.totalorder %s42, 1
        %s783 = scalar_select %p782, %s42, 1
        %s784 = scalar_lea.vmem %s12, %s783
        %p786 = scmp.eq.s32.totalorder %s42, 0
        // Predicated region
        $region97: #{tpu_custom_call.1} parent=75 // pred_check
          %p787 = pneg %p786
        $region98: #{tpu_custom_call.1} parent=75 // pred_check_branch
          %789 = sbr.rel (%p787) target = $region100
        $region99: #{tpu_custom_call.1} parent=75 // pred_region
          %v790 = vld [vmem:[%s615] sm:$0xff]
          %vm791 = vcmask 261120
          %792 = vst.msk [vmem:[#allocation2] sm:$0xff] %vm791, %v790
        $region100: #{tpu_custom_call.1} parent=75 // pred_fallthru
          _
        %v793 = vld [vmem:[#allocation2] sm:$0xff]
        %v794 = vpack.c.bf16 %v793, %v793
        %v795 = vld [vmem:[%s754] sm:$0xf]
        %v796 = vld [vmem:[%s754 + $0x4] sm:$0xf]
        %v797 = vld [vmem:[%s754 + $0x8] sm:$0xf]
        %v798 = vld [vmem:[%s754 + $0xc] sm:$0xf]
        %v799 = vld [vmem:[%s634] sm:$0x1]
        %v801 = vperm.slane %v799, 0
        %v807 = vunpack.c.l.b16 %v795
        %v808 = vunpack.c.l.b16 %v796
        %v809 = vunpack.c.l.b16 %v797
        %v810 = vunpack.c.l.b16 %v798
        %v811 = vpack.c.b16 %v808, %v807
        %v812 = vpack.c.b16 %v810, %v809
        %vm815 = vcmask 261120
        %v817 = vsel %vm815, %v794, 0
        %819 = vmatpush.bf16.msra.mxu0 0
        %820 = vmatpush.bf16.msra.mxu0 0
        %821 = vmatpush.bf16.msra.mxu0 0
        %822 = vmatpush.bf16.msra.mxu0 0
        %823 = vmatpush.bf16.msra.mxu0 0
        %824 = vmatpush.bf16.msra.mxu0 0
        %825 = vmatpush.bf16.msra.mxu0 %v812
        %826 = vmatpush.bf16.msra.mxu0 %v811
        %827 = vmatmul.bf16.gmra.mxu0 %v817
        %v828 = vpop.f32.mrf.mxu0
        %v829 = vadd.f32 %v801, %v828
        %v830 = vpop.f32.mrf.mxu0
        %831 = vdwg.mxu0
        %v832 = vld [vmem:[%s625] sm:$0xf]
        %v833 = vunpack.c.l.bf16 %v832
        %v834 = vpack.c.bf16 %v829, %v829
        %v836 = vunpack.c.l.b16 %v834
        %v837 = vpack.c.b16 %v836, %v836
        %838 = vrot.lane.b32.xlu0 %v837, 96
        %v839 = vpop.permute.xlu0 %838
        %vm840 = vcmask 64512
        %v842 = vsel %vm840, %v834, 0
        %v845 = vsel %vm840, %v839, 0
        %847 = vmatpush.bf16.xpose.msra.mxu0 0
        %848 = vmatpush.bf16.xpose.msra.mxu0 0
        %849 = vmatpush.bf16.xpose.msra.mxu0 0
        %850 = vmatpush.bf16.xpose.msra.mxu0 0
        %851 = vmatpush.bf16.xpose.msra.mxu0 0
        %852 = vmatpush.bf16.xpose.msra.mxu0 0
        %853 = vmatpush.bf16.xpose.msra.mxu0 0
        %854 = vmatpush.bf16.xpose.msra.mxu0 %v845
        %855 = vmatmul.bf16.gmra.mxu0 %v842
        %v856 = vpop.f32.mrf.mxu0
        %v857 = vadd.f32 %v833, %v856
        %v858 = vpop.f32.mrf.mxu0
        %859 = vdwg.mxu0
        %v860 = vsel %vm840, %v857, -inf
        %861 = vmax.xlane.f32.xlu0 %v860
        %v862 = vpop.xlane.xlu0 %861
        %v863 = vsub.f32 %v857, %v862
        %v864 = vmul.f32 %v863, 1.442695
        %v865 = vpow.pop %v864
        %v866 = vsel %vm840, %v865, 0.0
        %867 = vadd.xlane.f32.xlu0 %v866
        %v868 = vpop.xlane.xlu0 %867
        %v869 = vrcp.pop %v868
        %v870 = vmul.f32 %v868, %v869
        %v871 = vsub.f32 1.0, %v870
        %v872 = vmul.f32 %v869, %v871
        %v873 = vadd.f32 %v869, %v872
        %vm874 = vweird.f32 %v868
        %vm875 = vweird.f32 %v869
        %vm876 = vmor %vm874, %vm875
        %v877 = vsel %vm876, %v869, %v873
        %v878 = vand.u32 2147483647, %v868
        %vm879 = vcmp.eq.f32.partialorder %v878, 8.507059e+37
        %v880 = vand.u32 %v868, 2147483648
        %v881 = vor.u32 1.1754944e-38, %v880
        %v882 = vsel %vm879, %v881, %v877
        %v883 = vmul.f32 %v865, %v882
        %v884 = vpack.c.bf16 %v883, %v883
        %885 = vrot.lane.b32.xlu0 %v837, 64
        %v886 = vpop.permute.xlu0 %885
        %v888 = vsel %vm840, %v884, 0
        %vm890 = vcmask 1043456
        %v892 = vsel %vm890, %v886, 0
        %894 = vmatpush.bf16.msra.mxu0 0
        %895 = vmatpush.bf16.msra.mxu0 0
        %896 = vmatpush.bf16.msra.mxu0 0
        %897 = vmatpush.bf16.msra.mxu0 0
        %898 = vmatpush.bf16.msra.mxu0 0
        %899 = vmatpush.bf16.msra.mxu0 0
        %900 = vmatpush.bf16.msra.mxu0 0
        %901 = vmatpush.bf16.msra.mxu0 %v892
        %902 = vmatmul.bf16.gmra.mxu0 %v888
        %v903 = vpop.f32.mrf.mxu0
        %v904 = vadd.f32 0.0, %v903
        %v905 = vpop.f32.mrf.mxu0
        %906 = vdwg.mxu0
        %907 = vrot.lane.b32.xlu0 %v837, 120
        %v908 = vpop.permute.xlu0 %907
        %909 = vrot.lane.b32.xlu0 %v837, 88
        %v910 = vpop.permute.xlu0 %909
        %v912 = vsel %vm840, %v908, 0
        %v915 = vsel %vm840, %v910, 0
        %917 = vmatpush.bf16.xpose.msra.mxu0 0
        %918 = vmatpush.bf16.xpose.msra.mxu0 0
        %919 = vmatpush.bf16.xpose.msra.mxu0 0
        %920 = vmatpush.bf16.xpose.msra.mxu0 0
        %921 = vmatpush.bf16.xpose.msra.mxu0 0
        %922 = vmatpush.bf16.xpose.msra.mxu0 0
        %923 = vmatpush.bf16.xpose.msra.mxu0 0
        %924 = vmatpush.bf16.xpose.msra.mxu0 %v915
        %925 = vmatmul.bf16.gmra.mxu0 %v912
        %v926 = vpop.f32.mrf.mxu0
        %v927 = vadd.f32 %v833, %v926
        %v928 = vpop.f32.mrf.mxu0
        %929 = vdwg.mxu0
        %v930 = vsel %vm840, %v927, -inf
        %931 = vmax.xlane.f32.xlu0 %v930
        %v932 = vpop.xlane.xlu0 %931
        %v933 = vsub.f32 %v927, %v932
        %v934 = vmul.f32 %v933, 1.442695
        %v935 = vpow.pop %v934
        %v936 = vsel %vm840, %v935, 0.0
        %937 = vadd.xlane.f32.xlu0 %v936
        %v938 = vpop.xlane.xlu0 %937
        %v939 = vrcp.pop %v938
        %v940 = vmul.f32 %v938, %v939
        %v941 = vsub.f32 1.0, %v940
        %v942 = vmul.f32 %v939, %v941
        %v943 = vadd.f32 %v939, %v942
        %vm944 = vweird.f32 %v938
        %vm945 = vweird.f32 %v939
        %vm946 = vmor %vm944, %vm945
        %v947 = vsel %vm946, %v939, %v943
        %v948 = vand.u32 2147483647, %v938
        %vm949 = vcmp.eq.f32.partialorder %v948, 8.507059e+37
        %v950 = vand.u32 %v938, 2147483648
        %v951 = vor.u32 1.1754944e-38, %v950
        %v952 = vsel %vm949, %v951, %v947
        %v953 = vmul.f32 %v935, %v952
        %v954 = vpack.c.bf16 %v953, %v953
        %955 = vrot.lane.b32.xlu0 %v837, 56
        %v956 = vpop.permute.xlu0 %955
        %v958 = vsel %vm840, %v954, 0
        %v961 = vsel %vm890, %v956, 0
        %963 = vmatpush.bf16.msra.mxu0 0
        %964 = vmatpush.bf16.msra.mxu0 0
        %965 = vmatpush.bf16.msra.mxu0 0
        %966 = vmatpush.bf16.msra.mxu0 0
        %967 = vmatpush.bf16.msra.mxu0 0
        %968 = vmatpush.bf16.msra.mxu0 0
        %969 = vmatpush.bf16.msra.mxu0 0
        %970 = vmatpush.bf16.msra.mxu0 %v961
        %971 = vmatmul.bf16.gmra.mxu0 %v958
        %v972 = vpop.f32.mrf.mxu0
        %v973 = vadd.f32 0.0, %v972
        %v974 = vpop.f32.mrf.mxu0
        %975 = vdwg.mxu0
        %976 = vrot.lane.b32.xlu0 %v837, 112
        %v977 = vpop.permute.xlu0 %976
        %978 = vrot.lane.b32.xlu0 %v837, 80
        %v979 = vpop.permute.xlu0 %978
        %v981 = vsel %vm840, %v977, 0
        %v984 = vsel %vm840, %v979, 0
        %986 = vmatpush.bf16.xpose.msra.mxu0 0
        %987 = vmatpush.bf16.xpose.msra.mxu0 0
        %988 = vmatpush.bf16.xpose.msra.mxu0 0
        %989 = vmatpush.bf16.xpose.msra.mxu0 0
        %990 = vmatpush.bf16.xpose.msra.mxu0 0
        %991 = vmatpush.bf16.xpose.msra.mxu0 0
        %992 = vmatpush.bf16.xpose.msra.mxu0 0
        %993 = vmatpush.bf16.xpose.msra.mxu0 %v984
        %994 = vmatmul.bf16.gmra.mxu0 %v981
        %v995 = vpop.f32.mrf.mxu0
        %v996 = vadd.f32 %v833, %v995
        %v997 = vpop.f32.mrf.mxu0
        %998 = vdwg.mxu0
        %v999 = vsel %vm840, %v996, -inf
        %1000 = vmax.xlane.f32.xlu0 %v999
        %v1001 = vpop.xlane.xlu0 %1000
        %v1002 = vsub.f32 %v996, %v1001
        %v1003 = vmul.f32 %v1002, 1.442695
        %v1004 = vpow.pop %v1003
        %v1005 = vsel %vm840, %v1004, 0.0
        %1006 = vadd.xlane.f32.xlu0 %v1005
        %v1007 = vpop.xlane.xlu0 %1006
        %v1008 = vrcp.pop %v1007
        %v1009 = vmul.f32 %v1007, %v1008
        %v1010 = vsub.f32 1.0, %v1009
        %v1011 = vmul.f32 %v1008, %v1010
        %v1012 = vadd.f32 %v1008, %v1011
        %vm1013 = vweird.f32 %v1007
        %vm1014 = vweird.f32 %v1008
        %vm1015 = vmor %vm1013, %vm1014
        %v1016 = vsel %vm1015, %v1008, %v1012
        %v1017 = vand.u32 2147483647, %v1007
        %vm1018 = vcmp.eq.f32.partialorder %v1017, 8.507059e+37
        %v1019 = vand.u32 %v1007, 2147483648
        %v1020 = vor.u32 1.1754944e-38, %v1019
        %v1021 = vsel %vm1018, %v1020, %v1016
        %v1022 = vmul.f32 %v1004, %v1021
        %v1023 = vpack.c.bf16 %v1022, %v1022
        %1024 = vrot.lane.b32.xlu0 %v837, 48
        %v1025 = vpop.permute.xlu0 %1024
        %v1027 = vsel %vm840, %v1023, 0
        %v1030 = vsel %vm890, %v1025, 0
        %1032 = vmatpush.bf16.msra.mxu0 0
        %1033 = vmatpush.bf16.msra.mxu0 0
        %1034 = vmatpush.bf16.msra.mxu0 0
        %1035 = vmatpush.bf16.msra.mxu0 0
        %1036 = vmatpush.bf16.msra.mxu0 0
        %1037 = vmatpush.bf16.msra.mxu0 0
        %1038 = vmatpush.bf16.msra.mxu0 0
        %1039 = vmatpush.bf16.msra.mxu0 %v1030
        %1040 = vmatmul.bf16.gmra.mxu0 %v1027
        %v1041 = vpop.f32.mrf.mxu0
        %v1042 = vadd.f32 0.0, %v1041
        %v1043 = vpop.f32.mrf.mxu0
        %1044 = vdwg.mxu0
        %1045 = vrot.lane.b32.xlu0 %v837, 104
        %v1046 = vpop.permute.xlu0 %1045
        %1047 = vrot.lane.b32.xlu0 %v837, 72
        %v1048 = vpop.permute.xlu0 %1047
        %v1050 = vsel %vm840, %v1046, 0
        %v1053 = vsel %vm840, %v1048, 0
        %1055 = vmatpush.bf16.xpose.msra.mxu0 0
        %1056 = vmatpush.bf16.xpose.msra.mxu0 0
        %1057 = vmatpush.bf16.xpose.msra.mxu0 0
        %1058 = vmatpush.bf16.xpose.msra.mxu0 0
        %1059 = vmatpush.bf16.xpose.msra.mxu0 0
        %1060 = vmatpush.bf16.xpose.msra.mxu0 0
        %1061 = vmatpush.bf16.xpose.msra.mxu0 0
        %1062 = vmatpush.bf16.xpose.msra.mxu0 %v1053
        %1063 = vmatmul.bf16.gmra.mxu0 %v1050
        %v1064 = vpop.f32.mrf.mxu0
        %v1065 = vadd.f32 %v833, %v1064
        %v1066 = vpop.f32.mrf.mxu0
        %1067 = vdwg.mxu0
        %v1068 = vsel %vm840, %v1065, -inf
        %1069 = vmax.xlane.f32.xlu0 %v1068
        %v1070 = vpop.xlane.xlu0 %1069
        %v1071 = vsub.f32 %v1065, %v1070
        %v1072 = vmul.f32 %v1071, 1.442695
        %v1073 = vpow.pop %v1072
        %v1074 = vsel %vm840, %v1073, 0.0
        %1075 = vadd.xlane.f32.xlu0 %v1074
        %v1076 = vpop.xlane.xlu0 %1075
        %v1077 = vrcp.pop %v1076
        %v1078 = vmul.f32 %v1076, %v1077
        %v1079 = vsub.f32 1.0, %v1078
        %v1080 = vmul.f32 %v1077, %v1079
        %v1081 = vadd.f32 %v1077, %v1080
        %vm1082 = vweird.f32 %v1076
        %vm1083 = vweird.f32 %v1077
        %vm1084 = vmor %vm1082, %vm1083
        %v1085 = vsel %vm1084, %v1077, %v1081
        %v1086 = vand.u32 2147483647, %v1076
        %vm1087 = vcmp.eq.f32.partialorder %v1086, 8.507059e+37
        %v1088 = vand.u32 %v1076, 2147483648
        %v1089 = vor.u32 1.1754944e-38, %v1088
        %v1090 = vsel %vm1087, %v1089, %v1085
        %v1091 = vmul.f32 %v1073, %v1090
        %v1092 = vpack.c.bf16 %v1091, %v1091
        %1093 = vrot.lane.b32.xlu0 %v837, 40
        %v1094 = vpop.permute.xlu0 %1093
        %v1096 = vsel %vm840, %v1092, 0
        %v1099 = vsel %vm890, %v1094, 0
        %1101 = vmatpush.bf16.msra.mxu0 0
        %1102 = vmatpush.bf16.msra.mxu0 0
        %1103 = vmatpush.bf16.msra.mxu0 0
        %1104 = vmatpush.bf16.msra.mxu0 0
        %1105 = vmatpush.bf16.msra.mxu0 0
        %1106 = vmatpush.bf16.msra.mxu0 0
        %1107 = vmatpush.bf16.msra.mxu0 0
        %1108 = vmatpush.bf16.msra.mxu0 %v1099
        %1109 = vmatmul.bf16.gmra.mxu0 %v1096
        %v1110 = vpop.f32.mrf.mxu0
        %v1111 = vadd.f32 0.0, %v1110
        %v1112 = vpop.f32.mrf.mxu0
        %1113 = vdwg.mxu0
        %1115 = vrot.lane.b32.xlu0 %v973, 8
        %v1116 = vpop.permute.xlu0 %1115
        %1119 = vrot.lane.b32.xlu0 %v1042, 16
        %v1120 = vpop.permute.xlu0 %1119
        %1123 = vrot.lane.b32.xlu0 %v1111, 24
        %v1124 = vpop.permute.xlu0 %1123
        %v1126 = vsel %vm840, %v904, %v1116
        %vm1127 = vcmask 130048
        %v1128 = vsel %vm1127, %v1126, %v1120
        %vm1129 = vcmask 195584
        %v1130 = vsel %vm1129, %v1128, %v1124
        %v1131 = vpack.c.bf16 %v1130, %v1130
        %v1132 = vld [vmem:[%s759] sm:$0xf]
        %v1133 = vld [vmem:[%s759 + $0x4] sm:$0xf]
        %v1134 = vld [vmem:[%s759 + $0x8] sm:$0xf]
        %v1135 = vld [vmem:[%s759 + $0xc] sm:$0xf]
        %v1136 = vld [vmem:[%s762] sm:$0x1]
        %v1138 = vperm.slane %v1136, 0
        %v1144 = vunpack.c.l.b16 %v1132
        %v1145 = vunpack.c.l.b16 %v1133
        %v1146 = vunpack.c.l.b16 %v1134
        %v1147 = vunpack.c.l.b16 %v1135
        %v1148 = vpack.c.b16 %v1145, %v1144
        %v1149 = vpack.c.b16 %v1147, %v1146
        %v1153 = vsel %vm815, %v1131, 0
        %1155 = vmatpush.bf16.msra.mxu0 0
        %1156 = vmatpush.bf16.msra.mxu0 0
        %1157 = vmatpush.bf16.msra.mxu0 0
        %1158 = vmatpush.bf16.msra.mxu0 0
        %1159 = vmatpush.bf16.msra.mxu0 0
        %1160 = vmatpush.bf16.msra.mxu0 0
        %1161 = vmatpush.bf16.msra.mxu0 %v1149
        %1162 = vmatpush.bf16.msra.mxu0 %v1148
        %1163 = vmatmul.bf16.gmra.mxu0 %v1153
        %v1164 = vpop.f32.mrf.mxu0
        %v1165 = vadd.f32 %v1138, %v1164
        %v1166 = vpop.f32.mrf.mxu0
        %1167 = vdwg.mxu0
        %v1168 = vadd.f32 %v793, %v1165
        %v1169 = vld [vmem:[%s765] sm:$0x1]
        %v1170 = vld [vmem:[%s643] sm:$0x1]
        %v1171 = vsel %vm815, %v1168, 0.0
        %1172 = vadd.xlane.f32.xlu0 %v1171
        %v1173 = vpop.xlane.xlu0 %1172
        %v1174 = vrcp.pop 32.0
        %v1175 = vmul.f32 32.0, %v1174
        %v1176 = vsub.f32 1.0, %v1175
        %v1177 = vmul.f32 %v1174, %v1176
        %v1178 = vadd.f32 %v1174, %v1177
        %vm1179 = vweird.f32 %v1174
        %v1180 = vsel %vm1179, %v1174, %v1178
        %v1181 = vmul.f32 %v1173, %v1180
        %v1182 = vsub.f32 %v1168, %v1181
        %v1183 = vmul.f32 %v1182, %v1182
        %v1184 = vsel %vm815, %v1183, 0.0
        %1185 = vadd.xlane.f32.xlu0 %v1184
        %v1186 = vpop.xlane.xlu0 %1185
        %v1187 = vmul.f32 %v1186, %v1180
        %v1188 = vadd.f32 %v1187, 1e-12
        %v1189 = vrsqrt.pop %v1188
        %v1190 = vmul.f32 %v1189, %v1188
        %v1191 = vmul.f32 %v1190, %v1189
        %v1192 = vmul.f32 0.5, %v1191
        %v1193 = vsub.f32 1.5, %v1192
        %v1194 = vmul.f32 %v1189, %v1193
        %vm1195 = vweird.f32 %v1188
        %vm1196 = vweird.f32 %v1189
        %vm1197 = vmor %vm1195, %vm1196
        %v1198 = vsel %vm1197, %v1189, %v1194
        %v1199 = vmul.f32 %v1182, %v1198
        %v1201 = vperm.slane %v1169, 0
        %v1203 = vmul.f32 %v1201, %v1199
        %v1205 = vperm.slane %v1170, 0
        %v1207 = vadd.f32 %v1203, %v1205
        %v1208 = vpack.c.bf16 %v1207, %v1207
        %v1209 = vld [vmem:[%s770] sm:$0xf]
        %v1210 = vld [vmem:[%s770 + $0x4] sm:$0xf]
        %v1211 = vld [vmem:[%s770 + $0x8] sm:$0xf]
        %v1212 = vld [vmem:[%s770 + $0xc] sm:$0xf]
        %v1213 = vld [vmem:[%s773] sm:$0x1]
        %v1215 = vperm.slane %v1213, 0
        %v1221 = vunpack.c.l.b16 %v1209
        %v1222 = vunpack.c.l.b16 %v1210
        %v1223 = vunpack.c.l.b16 %v1211
        %v1224 = vunpack.c.l.b16 %v1212
        %v1225 = vpack.c.b16 %v1222, %v1221
        %v1226 = vpack.c.b16 %v1224, %v1223
        %v1230 = vsel %vm815, %v1208, 0
        %1232 = vmatpush.bf16.msra.mxu0 0
        %1233 = vmatpush.bf16.msra.mxu0 0
        %1234 = vmatpush.bf16.msra.mxu0 0
        %1235 = vmatpush.bf16.msra.mxu0 0
        %1236 = vmatpush.bf16.msra.mxu0 0
        %1237 = vmatpush.bf16.msra.mxu0 0
        %1238 = vmatpush.bf16.msra.mxu0 %v1226
        %1239 = vmatpush.bf16.msra.mxu0 %v1225
        %1240 = vmatmul.bf16.gmra.mxu0 %v1230
        %v1241 = vpop.f32.mrf.mxu0
        %v1242 = vadd.f32 %v1215, %v1241
        %v1243 = vpop.f32.mrf.mxu0
        %1244 = vdwg.mxu0
        %v1245 = vmax.f32 %v1242, 0.0
        %v1246 = vpack.c.bf16 %v1245, %v1245
        %v1247 = vld [vmem:[%s778] sm:$0xf]
        %v1248 = vld [vmem:[%s778 + $0x4] sm:$0xf]
        %v1249 = vld [vmem:[%s778 + $0x8] sm:$0xf]
        %v1250 = vld [vmem:[%s778 + $0xc] sm:$0xf]
        %v1251 = vld [vmem:[%s778 + $0x10] sm:$0xf]
        %v1252 = vld [vmem:[%s778 + $0x14] sm:$0xf]
        %v1253 = vld [vmem:[%s778 + $0x18] sm:$0xf]
        %v1254 = vld [vmem:[%s778 + $0x1c] sm:$0xf]
        %v1255 = vld [vmem:[%s781] sm:$0x1]
        %v1257 = vperm.slane %v1255, 0
        %v1267 = vunpack.c.l.b16 %v1247
        %v1268 = vunpack.c.l.b16 %v1248
        %v1269 = vunpack.c.l.b16 %v1249
        %v1270 = vunpack.c.l.b16 %v1250
        %v1271 = vunpack.c.l.b16 %v1251
        %v1272 = vunpack.c.l.b16 %v1252
        %v1273 = vunpack.c.l.b16 %v1253
        %v1274 = vunpack.c.l.b16 %v1254
        %v1275 = vpack.c.b16 %v1268, %v1267
        %v1276 = vpack.c.b16 %v1270, %v1269
        %v1277 = vpack.c.b16 %v1272, %v1271
        %v1278 = vpack.c.b16 %v1274, %v1273
        %vm1283 = vcmask 523264
        %v1285 = vsel %vm1283, %v1246, 0
        %1287 = vmatpush.bf16.msra.mxu0 0
        %1288 = vmatpush.bf16.msra.mxu0 0
        %1289 = vmatpush.bf16.msra.mxu0 0
        %1290 = vmatpush.bf16.msra.mxu0 0
        %1291 = vmatpush.bf16.msra.mxu0 %v1278
        %1292 = vmatpush.bf16.msra.mxu0 %v1277
        %1293 = vmatpush.bf16.msra.mxu0 %v1276
        %1294 = vmatpush.bf16.msra.mxu0 %v1275
        %1295 = vmatmul.bf16.gmra.mxu0 %v1285
        %v1296 = vpop.f32.mrf.mxu0
        %v1297 = vadd.f32 %v1257, %v1296
        %v1298 = vpop.f32.mrf.mxu0
        %1299 = vdwg.mxu0
        %v1300 = vadd.f32 %v1207, %v1297
        %v1301 = vld [vmem:[%s784] sm:$0x1]
        %v1302 = vld [vmem:[%s652] sm:$0x1]
        %v1303 = vsel %vm815, %v1300, 0.0
        %1304 = vadd.xlane.f32.xlu0 %v1303
        %v1305 = vpop.xlane.xlu0 %1304
        %v1306 = vmul.f32 %v1305, %v1180
        %v1307 = vsub.f32 %v1300, %v1306
        %v1308 = vmul.f32 %v1307, %v1307
        %v1309 = vsel %vm815, %v1308, 0.0
        %1310 = vadd.xlane.f32.xlu0 %v1309
        %v1311 = vpop.xlane.xlu0 %1310
        %v1312 = vmul.f32 %v1311, %v1180
        %v1313 = vadd.f32 %v1312, 1e-12
        %v1314 = vrsqrt.pop %v1313
        %v1315 = vmul.f32 %v1314, %v1313
        %v1316 = vmul.f32 %v1315, %v1314
        %v1317 = vmul.f32 0.5, %v1316
        %v1318 = vsub.f32 1.5, %v1317
        %v1319 = vmul.f32 %v1314, %v1318
        %vm1320 = vweird.f32 %v1313
        %vm1321 = vweird.f32 %v1314
        %vm1322 = vmor %vm1320, %vm1321
        %v1323 = vsel %vm1322, %v1314, %v1319
        %v1324 = vmul.f32 %v1307, %v1323
        %v1326 = vperm.slane %v1301, 0
        %v1328 = vmul.f32 %v1326, %v1324
        %v1330 = vperm.slane %v1302, 0
        %v1332 = vadd.f32 %v1328, %v1330
        %1333 = vst.msk [vmem:[#allocation2] sm:$0xff] %vm815, %v1332
        %p1334 = scmp.eq.s32.totalorder %s42, 1
        // Predicated region
        $region101: #{tpu_custom_call.1} parent=75 // pred_check
          %p1335 = pneg %p1334
        $region102: #{tpu_custom_call.1} parent=75 // pred_check_branch
          %1337 = sbr.rel (%p1335) target = $region104
        $region103: #{tpu_custom_call.1} parent=75 // pred_region
          %1338 = vst.msk [vmem:[%s749] sm:$0xff] %vm815, %v1332
        $region104: #{tpu_custom_call.1} parent=75 // pred_fallthru
          _
        %s1339 = sand.u32 %s421, 1
        %s1340 = scalar_lea.sflag [#allocation5], %s1339
        %s1341 = sand.u32 %s421, 1
        %s1342 = smul.addr %s1341, 8
        %s1343 = scalar_lea.vmem [#allocation12], %s1342
        // Predicated region
        $region105: #{tpu_custom_call.1} parent=75 // pred_check
          %p1344 = pneg %p431
        $region106: #{tpu_custom_call.1} parent=75 // pred_check_branch
          %1346 = sbr.rel (%p1344) target = $region108
        $region107: #{tpu_custom_call.1} parent=75 // pred_region
          %1348 = vsyncadd %s1340, 0
          %s1349 = smul.addr %s41, 8
          %s1350 = scalar_lea.hbm %s14, %s1349
          %s1352 = sshll.u32 %s1343, 4
          %s1353 = int_to_ptr.vmem [resolvable:$true] %s1352
          %s1354 = sshll.u32 %s1350, 4
          %s1355 = int_to_ptr.hbm [resolvable:$true] %s1354
          %1357 = dma.vmem_to_hbm [thread:$0]  %s1353, 128, %s1355, %s1340
        $region108: #{tpu_custom_call.1} parent=75 // pred_fallthru
          _
      $region76: #{tpu_custom_call.1} parent=5 // pred_fallthru
        _
      %p1358 = scmp.le.s32.totalorder 2, %s32
      // Predicated region
      $region109: #{tpu_custom_call.1} parent=5 // pred_check
        %p1359 = pneg %p1358
      $region110: #{tpu_custom_call.1} parent=5 // pred_check_branch
        %1361 = sbr.rel (%p1359) target = $region112
      $region111: #{tpu_custom_call.1} parent=5 // pred_region
        %s1362 = ssub.s32 %s32, 2
        // Predicated region
        $region113: #{tpu_custom_call.1} parent=111 // pred_check
          %p1363 = pneg %p437
        $region114: #{tpu_custom_call.1} parent=111 // pred_check_branch
          %1365 = sbr.rel (%p1363) target = $region116
        $region115: #{tpu_custom_call.1} parent=111 // pred_region
          %s1366 = sand.u32 %s422, 1
          %s1367 = scalar_lea.sflag [#allocation5], %s1366
          %s1368 = sand.u32 %s422, 1
          %s1369 = smul.addr %s1368, 8
          %s1370 = scalar_lea.vmem [#allocation12], %s1369
          %1372 = dma.done %s1367, 128
        $region116: #{tpu_custom_call.1} parent=111 // pred_fallthru
          _
      $region112: #{tpu_custom_call.1} parent=5 // pred_fallthru
        _
    $region6: #{tpu_custom_call.1} parent=1 // loop_footer
      %s36 = sadd.s32 1, %s32
    $region7: #{tpu_custom_call.1} parent=1 // loop_footer_branch
      %31 = sbr.rel target = $region3
    $region8: #{tpu_custom_call.1} parent=1 // loop_exit
      _
    %1373 = vsyncpa [#allocation4], 1
    %s1374 = scalar_lea.sflag [#allocation4], 1
    %1375 = vsyncpa %s1374, 1
    %1376 = vsyncpa [#allocation7], 1
    %s1377 = scalar_lea.sflag [#allocation7], 1
    %1378 = vsyncpa %s1377, 1
    %1379 = vsyncpa [#allocation10], 1
    %s1380 = scalar_lea.sflag [#allocation10], 1
    %1381 = vsyncpa %s1380, 1
    %1382 = vsyncpa [#allocation5], 1
    %s1383 = scalar_lea.sflag [#allocation5], 1
    %1384 = vsyncpa %s1383, 1

</llo_original>
